<compile_context>
chip_gen: v7x
topology: tpu7x:2x2x1
jax: 0.10.0
libtpu: 0.0.40
codegen_flags: <defaults>
</compile_context>

<pallas_src>
import functools
import math

import jax
import jax.numpy as jnp
from jax.experimental import pallas as pl
from jax.experimental.pallas import tpu as pltpu

SQRT_2_OVER_PI = 0.7978845608028654  # sqrt(2 / pi)
LN_EPS = 1e-5


# ----------------------------------------------------------------------------- helpers
def _new_gelu(x):
    # identical to the PyTorch new_gelu (tanh approximation)
    return 0.5 * x * (1.0 + jnp.tanh(SQRT_2_OVER_PI * (x + 0.044715 * x * x * x)))


def _layer_norm(x, g, b):
    mu = jnp.mean(x, axis=-1, keepdims=True)
    xc = x - mu
    var = jnp.mean(xc * xc, axis=-1, keepdims=True)
    return xc * jax.lax.rsqrt(var + LN_EPS) * g + b


def _dot(a, b):
    return jnp.dot(a, b, preferred_element_type=jnp.float32)


def _dot_nt(a, b):
    """a @ b.T without materializing the transpose (MXU handles the NT form)."""
    return jax.lax.dot_general(a, b, (((1,), (1,)), ((), ())),
                               preferred_element_type=jnp.float32)


def _round_up(n, m):
    return ((n + m - 1) // m) * m


def _const_spec(shape):
    """BlockSpec whose block index never changes: single-buffered to save VMEM."""
    index_map = lambda *_: (0,) * len(shape)
    try:
        return pl.BlockSpec(shape, index_map, pipeline_mode=pl.Buffered(1))
    except (TypeError, AttributeError):  # older jax: fall back to default buffering
        return pl.BlockSpec(shape, index_map)


# ----------------------------------------------------------------------------- kernels
def _spattn_fcinit_kernel(x_ref, wq_ref, wk_ref, wv_ref, bq_ref, bk_ref, bv_ref,
                          wp_ref, bp_ref, wi_ref, bi_ref, o_ref, *, nfeature):
    """out = fc_init( c_proj( spAttention(x) ) + x );  x block: (tm, NF)."""
    x = x_ref[...].astype(jnp.float32)
    q = _dot(x, wq_ref[...]) + bq_ref[...]
    k = _dot(x, wk_ref[...]) + bk_ref[...]
    v = _dot(x, wv_ref[...]) + bv_ref[...]

    # softmax over the feature axis j of the rank-1 scores q_i * k_j, without
    # materializing the (tm, NF, NF) tensor.  max_j(q_i k_j) is attained at
    # k_max or k_min (linear in k_j), so the stabilizer is exact.
    kmax = jnp.max(k, axis=-1, keepdims=True)
    kmin = jnp.min(k, axis=-1, keepdims=True)
    m = jnp.maximum(q * kmax, q * kmin)
    num = jnp.zeros_like(q)
    den = jnp.zeros_like(q)
    for j in range(nfeature):                       # static unroll (NF is small)
        e = jnp.exp(q * k[:, j:j + 1] - m)
        num = num + e * v[:, j:j + 1]
        den = den + e
    spv = num / den

    # TODO(synk): attn_dropout / resid_dropout are identity (eval mode).
    y = _dot(spv, wp_ref[...]) + bp_ref[...] + x    # c_proj + residual with input
    o_ref[...] = (_dot(y, wi_ref[...]) + bi_ref[...]).astype(o_ref.dtype)


def _block_kernel(x_ref, ln1g_ref, ln1b_ref, wq_ref, wk_ref, wv_ref,
                  bq_ref, bk_ref, bv_ref, wap_ref, bap_ref,
                  ln2g_ref, ln2b_ref, wfc_ref, bfc_ref, wmp_ref, bmp_ref,
                  o_ref, *, n_head, is_mask):
    """One transformer Block for a single batch element; x block: (T, C)."""
    x = x_ref[...].astype(jnp.float32)
    T, C = x.shape
    hd = C // n_head
    scale = 1.0 / math.sqrt(hd)

    # ---- time attention on ln_1(x)
    h = _layer_norm(x, ln1g_ref[...], ln1b_ref[...])
    q = _dot(h, wq_ref[...]) + bq_ref[...]
    k = _dot(h, wk_ref[...]) + bk_ref[...]
    v = _dot(h, wv_ref[...]) + bv_ref[...]

    if is_mask:
        row = jax.lax.broadcasted_iota(jnp.int32, (T, T), 0)
        col = jax.lax.broadcasted_iota(jnp.int32, (T, T), 1)
        causal = row >= col

    wap = wap_ref[...]                               # (C, C) attention c_proj weight
    attn = jnp.zeros((T, C), jnp.float32)
    for hh in range(n_head):                         # static unroll over heads
        s = hh * hd
        qh = q[:, s:s + hd]
        kh = k[:, s:s + hd]
        vh = v[:, s:s + hd]
        att = _dot_nt(qh, kh) * scale                # (T, T)
        if is_mask:
            att = jnp.where(causal, att, -jnp.inf)
        att = att - jnp.max(att, axis=-1, keepdims=True)
        p = jnp.exp(att)
        p = p / jnp.sum(p, axis=-1, keepdims=True)
        yh = _dot(p, vh)                             # (T, hd)
        attn = attn + _dot(yh, wap[s:s + hd, :])     # fold head merge into c_proj
    x = x + attn + bap_ref[...]                      # residual

    # ---- MLP on ln_2(x)
    h2 = _layer_norm(x, ln2g_ref[...], ln2b_ref[...])
    hm = _new_gelu(_dot(h2, wfc_ref[...]) + bfc_ref[...])
    mlp = _dot(hm, wmp_ref[...]) + bmp_ref[...]
    # TODO(synk): attn/resid/mlp dropout are identity (eval mode).
    o_ref[...] = (x + mlp).astype(o_ref.dtype)


def _lnf_fcout_kernel(x_ref, g_ref, b_ref, w_ref, o_ref):
    """out = ln_f(x) @ W_out  (fc_out has no bias);  x block: (tm, C)."""
    x = x_ref[...].astype(jnp.float32)
    h = _layer_norm(x, g_ref[...], b_ref[...])
    o_ref[...] = _dot(h, w_ref[...]).astype(o_ref.dtype)


# ----------------------------------------------------------------------------- pallas_call wrappers
def _row_tiled_call(kernel, x2d, consts, out_dim, out_dtype, *, tile_m=256):
    """Run a token-parallel kernel over rows of x2d with resident weights."""
    n, cin = x2d.shape
    tm = min(_round_up(tile_m, 8), _round_up(n, 8))
    n_pad = _round_up(n, tm)
    if n_pad != n:
        x2d = jnp.pad(x2d, ((0, n_pad - n), (0, 0)))
    out = pl.pallas_call(
        kernel,
        out_shape=jax.ShapeDtypeStruct((n_pad, out_dim), out_dtype),
        grid_spec=pltpu.PrefetchScalarGridSpec(
            num_scalar_prefetch=0,
            grid=(n_pad // tm,),
            in_specs=[pl.BlockSpec((tm, cin), lambda i: (i, 0))]
                     + [_const_spec(c.shape) for c in consts],
            out_specs=pl.BlockSpec((tm, out_dim), lambda i: (i, 0)),
        ),
        compiler_params=pltpu.CompilerParams(dimension_semantics=("parallel",)),
    )(x2d, *consts)
    return out[:n]


def _block_call(x, bp, *, n_head, is_mask):
    """Apply one transformer Block; grid over the batch dimension."""
    B, T, C = x.shape
    consts = (bp["ln1_g"], bp["ln1_b"], bp["wq"], bp["wk"], bp["wv"],
              bp["bq"], bp["bk"], bp["bv"], bp["wap"], bp["bap"],
              bp["ln2_g"], bp["ln2_b"], bp["wfc"], bp["bfc"], bp["wmp"], bp["bmp"])
    kernel = functools.partial(_block_kernel, n_head=n_head, is_mask=is_mask)
    return pl.pallas_call(
        kernel,
        out_shape=jax.ShapeDtypeStruct((B, T, C), x.dtype),
        grid_spec=pltpu.PrefetchScalarGridSpec(
            num_scalar_prefetch=0,
            grid=(B,),
            in_specs=[pl.BlockSpec((None, T, C), lambda b: (b, 0, 0))]
                     + [_const_spec(c.shape) for c in consts],
            out_specs=pl.BlockSpec((None, T, C), lambda b: (b, 0, 0)),
        ),
        compiler_params=pltpu.CompilerParams(dimension_semantics=("parallel",)),
    )(x, *consts)


def mynet_forward_pallas(inputs, kp, cfg):
    """inputs: (B, T, nfeature) with T == block_size."""
    B, T, NF = inputs.shape
    assert T == cfg["block_size"], f"sequence length {T} != block_size {cfg['block_size']}"
    C = cfg["ndim"]

    # spAttention + residual + fc_init (dropout = identity), token-parallel
    sp = kp["sp"]
    x2d = inputs.reshape(B * T, NF)
    xa = _row_tiled_call(
        functools.partial(_spattn_fcinit_kernel, nfeature=NF),
        x2d,
        (sp["wq"], sp["wk"], sp["wv"], sp["bq"], sp["bk"], sp["bv"],
         sp["wp"], sp["bp"], sp["wi"], sp["bi"]),
        C, inputs.dtype)
    x = xa.reshape(B, T, C)

    # transformer blocks (time attention needs the full sequence -> grid over B)
    for bp in kp["blocks"]:
        x = _block_call(x, bp, n_head=cfg["n_head"], is_mask=cfg["is_mask"])

    # ln_f + fc_out, token-parallel
    out2d = _row_tiled_call(
        _lnf_fcout_kernel,
        x.reshape(B * T, C),
        (kp["lnf_g"], kp["lnf_b"], kp["wout"]),
        cfg["target_dim"], inputs.dtype)
    return out2d.reshape(B, T, cfg["target_dim"])


# ----------------------------------------------------------------------------- params
def init_torch_layout_params(cfg, key):
    """Deterministic parameters in PyTorch nn.Linear layout: weight (out, in)."""
    NF, C, TD, L = cfg["nfeature"], cfg["ndim"], cfg["target_dim"], cfg["n_layer"]
    H = 4 * C
    ks = iter(jax.random.split(key, 64))

    def nrm(shape, std=0.02):
        return std * jax.random.normal(next(ks), shape, jnp.float32)

    p = dict(
        sp_attn_w=nrm((3 * NF, NF)), sp_attn_b=nrm((3 * NF,)),
        sp_proj_w=nrm((NF, NF)), sp_proj_b=nrm((NF,)),
        init_w=nrm((C, NF)), init_b=nrm((C,)),
        lnf_g=1.0 + nrm((C,), 0.1), lnf_b=nrm((C,), 0.1),
        out_w=nrm((TD, C)),
        blocks=[dict(
            ln1_g=1.0 + nrm((C,), 0.1), ln1_b=nrm((C,), 0.1),
            attn_w=nrm((3 * C, C)), attn_b=nrm((3 * C,)),
            aproj_w=nrm((C, C)), aproj_b=nrm((C,)),
            ln2_g=1.0 + nrm((C,), 0.1), ln2_b=nrm((C,), 0.1),
            fc_w=nrm((H, C)), fc_b=nrm((H,)),
            mproj_w=nrm((C, H)), mproj_b=nrm((C,)),
        ) for _ in range(L)],
    )
    return p


def prepare_kernel_params(p, cfg):
    """One-time conversion to kernel layout: weights (in, out), biases (1, out),
    qkv projections pre-split so the kernels never slice unaligned lanes."""
    NF, C = cfg["nfeature"], cfg["ndim"]

    def row(b):
        return jnp.asarray(b, jnp.float32).reshape(1, -1)

    sw, sb = p["sp_attn_w"], p["sp_attn_b"]
    sp = dict(
        wq=sw[0:NF].T, wk=sw[NF:2 * NF].T, wv=sw[2 * NF:3 * NF].T,
        bq=row(sb[0:NF]), bk=row(sb[NF:2 * NF]), bv=row(sb[2 * NF:3 * NF]),
        wp=p["sp_proj_w"].T, bp=row(p["sp_proj_b"]),
        wi=p["init_w"].T, bi=row(p["init_b"]),
    )
    blocks = []
    for bp in p["blocks"]:
        aw, ab = bp["attn_w"], bp["attn_b"]
        blocks.append(dict(
            ln1_g=row(bp["ln1_g"]), ln1_b=row(bp["ln1_b"]),
            wq=aw[0:C].T, wk=aw[C:2 * C].T, wv=aw[2 * C:3 * C].T,
            bq=row(ab[0:C]), bk=row(ab[C:2 * C]), bv=row(ab[2 * C:3 * C]),
            wap=bp["aproj_w"].T, bap=row(bp["aproj_b"]),
            ln2_g=row(bp["ln2_g"]), ln2_b=row(bp["ln2_b"]),
            wfc=bp["fc_w"].T, bfc=row(bp["fc_b"]),
            wmp=bp["mproj_w"].T, bmp=row(bp["mproj_b"]),
        ))
    return dict(sp=sp, blocks=blocks,
                lnf_g=row(p["lnf_g"]), lnf_b=row(p["lnf_b"]),
                wout=p["out_w"].T)


# ----------------------------------------------------------------------------- pure-JAX reference (mirrors the PyTorch forward)
def mynet_reference(inputs, p, cfg):
    def lin(x, w, b=None):
        y = jnp.einsum("...i,oi->...o", x, w)
        return y if b is None else y + b

    def ln(x, g, b):
        mu = jnp.mean(x, axis=-1, keepdims=True)
        var = jnp.mean((x - mu) ** 2, axis=-1, keepdims=True)
        return (x - mu) / jnp.sqrt(var + LN_EPS) * g + b

    B, T, _ = inputs.shape
    C, nh = cfg["ndim"], cfg["n_head"]
    hd = C // nh

    # spAttention + residual
    qkv = lin(inputs, p["sp_attn_w"], p["sp_attn_b"])
    q, k, v = jnp.split(qkv, 3, axis=-1)
    w = q[..., :, None] * k[..., None, :]
    nws = jax.nn.softmax(w, axis=-1)
    spv = jnp.sum(nws * v[..., None, :], axis=-1)
    x = lin(spv, p["sp_proj_w"], p["sp_proj_b"]) + inputs
    x = lin(x, p["init_w"], p["init_b"])            # fc_init (+ dropout identity)

    for bp in p["blocks"]:
        h = ln(x, bp["ln1_g"], bp["ln1_b"])
        qkv = lin(h, bp["attn_w"], bp["attn_b"])
        q, k, v = jnp.split(qkv, 3, axis=-1)

        def heads(z):
            return z.reshape(B, T, nh, hd).transpose(0, 2, 1, 3)

        q, k, v = heads(q), heads(k), heads(v)
        att = jnp.einsum("bhtd,bhsd->bhts", q, k) * (1.0 / math.sqrt(hd))
        if cfg["is_mask"]:
            causal = jnp.tril(jnp.ones((T, T), bool))
            att = jnp.where(causal, att, -jnp.inf)
        att = jax.nn.softmax(att, axis=-1)
        y = jnp.einsum("bhts,bhsd->bhtd", att, v)
        y = y.transpose(0, 2, 1, 3).reshape(B, T, C)
        x = x + lin(y, bp["aproj_w"], bp["aproj_b"])

        h2 = ln(x, bp["ln2_g"], bp["ln2_b"])
        hm = _new_gelu(lin(h2, bp["fc_w"], bp["fc_b"]))
        x = x + lin(hm, bp["mproj_w"], bp["mproj_b"])

    x = ln(x, p["lnf_g"], p["lnf_b"])
    return lin(x, p["out_w"])                       # fc_out, no bias


# ----------------------------------------------------------------------------- main
if __name__ == "__main__":
    cfg = dict(nfeature=16, ndim=32, n_head=4, n_layer=2, block_size=8,
               target_dim=4, is_bias=True, is_mask=True, dropout=0.1)
    B = 2

    key = jax.random.PRNGKey(0)
    kx, kparams_key = jax.random.split(key)
    inputs = jax.random.normal(kx, (B, cfg["block_size"], cfg["nfeature"]), jnp.float32)

    params = init_torch_layout_params(cfg, kparams_key)      # PyTorch layout
    kparams = prepare_kernel_params(params, cfg)              # kernel layout (hoisted, once)

    out = jax.block_until_ready(mynet_forward_pallas(inputs, kparams, cfg))
    ref = mynet_reference(inputs, params, cfg)

    assert out.shape == (B, cfg["block_size"], cfg["target_dim"])
    assert jnp.allclose(out, ref, atol=2e-3, rtol=2e-3), (
        "mismatch vs reference: max abs diff %e"
        % float(jnp.max(jnp.abs(out - ref))))
    print("KERNEL_OK")
</pallas_src>

<mosaic_0001>
module attributes {stable_mosaic.version = 11 : i64} {
  func.func @_spattn_fcinit_kernel(%arg0: i32, %arg1: memref<16x16xf32, #tpu.memory_space<vmem>>, %arg2: memref<16x16xf32, #tpu.memory_space<vmem>>, %arg3: memref<16x16xf32, #tpu.memory_space<vmem>>, %arg4: memref<16x16xf32, #tpu.memory_space<vmem>>, %arg5: memref<1x16xf32, #tpu.memory_space<vmem>>, %arg6: memref<1x16xf32, #tpu.memory_space<vmem>>, %arg7: memref<1x16xf32, #tpu.memory_space<vmem>>, %arg8: memref<16x16xf32, #tpu.memory_space<vmem>>, %arg9: memref<1x16xf32, #tpu.memory_space<vmem>>, %arg10: memref<16x32xf32, #tpu.memory_space<vmem>>, %arg11: memref<1x32xf32, #tpu.memory_space<vmem>>, %arg12: memref<16x32xf32, #tpu.memory_space<vmem>>) attributes {dimension_semantics = [#tpu.dimension_semantics<parallel>], iteration_bounds = array<i64: 1>, scalar_prefetch = 0 : i64, scratch_operands = 0 : i64, tpu.core_type = #tpu.core_type<tc>, window_params = [{transform_indices = @transform_0, window_bounds = array<i64: 16, 16>}, {pipeline_mode = #tpu.pipeline_mode<synchronous>, transform_indices = @transform_1, window_bounds = array<i64: 16, 16>}, {pipeline_mode = #tpu.pipeline_mode<synchronous>, transform_indices = @transform_2, window_bounds = array<i64: 16, 16>}, {pipeline_mode = #tpu.pipeline_mode<synchronous>, transform_indices = @transform_3, window_bounds = array<i64: 16, 16>}, {pipeline_mode = #tpu.pipeline_mode<synchronous>, transform_indices = @transform_4, window_bounds = array<i64: 1, 16>}, {pipeline_mode = #tpu.pipeline_mode<synchronous>, transform_indices = @transform_5, window_bounds = array<i64: 1, 16>}, {pipeline_mode = #tpu.pipeline_mode<synchronous>, transform_indices = @transform_6, window_bounds = array<i64: 1, 16>}, {pipeline_mode = #tpu.pipeline_mode<synchronous>, transform_indices = @transform_7, window_bounds = array<i64: 16, 16>}, {pipeline_mode = #tpu.pipeline_mode<synchronous>, transform_indices = @transform_8, window_bounds = array<i64: 1, 16>}, {pipeline_mode = #tpu.pipeline_mode<synchronous>, transform_indices = @transform_9, window_bounds = array<i64: 16, 32>}, {pipeline_mode = #tpu.pipeline_mode<synchronous>, transform_indices = @transform_10, window_bounds = array<i64: 1, 32>}, {transform_indices = @transform_11, window_bounds = array<i64: 16, 32>}]} {
    %c0 = arith.constant 0 : index
    %c0_0 = arith.constant 0 : index
    %0 = vector.load %arg1[%c0, %c0_0] : memref<16x16xf32, #tpu.memory_space<vmem>>, vector<16x16xf32>
    %c0_1 = arith.constant 0 : index
    %c0_2 = arith.constant 0 : index
    %1 = vector.load %arg2[%c0_1, %c0_2] : memref<16x16xf32, #tpu.memory_space<vmem>>, vector<16x16xf32>
    %cst = arith.constant dense<0.000000e+00> : vector<16x16xf32>
    %2 = tpu.matmul %0, %1, %cst {dimension_numbers = #tpu.dot_dimension_numbers<[1], [0], [0], [1], [0, 0, 1, 1], [], []>} : vector<16x16xf32>, vector<16x16xf32>, vector<16x16xf32> -> vector<16x16xf32>
    %c0_3 = arith.constant 0 : index
    %c0_4 = arith.constant 0 : index
    %3 = vector.load %arg5[%c0_3, %c0_4] : memref<1x16xf32, #tpu.memory_space<vmem>>, vector<1x16xf32>
    %4 = vector.broadcast %3 : vector<1x16xf32> to vector<16x16xf32>
    %5 = arith.addf %2, %4 : vector<16x16xf32>
    %c0_5 = arith.constant 0 : index
    %c0_6 = arith.constant 0 : index
    %6 = vector.load %arg3[%c0_5, %c0_6] : memref<16x16xf32, #tpu.memory_space<vmem>>, vector<16x16xf32>
    %cst_7 = arith.constant dense<0.000000e+00> : vector<16x16xf32>
    %7 = tpu.matmul %0, %6, %cst_7 {dimension_numbers = #tpu.dot_dimension_numbers<[1], [0], [0], [1], [0, 0, 1, 1], [], []>} : vector<16x16xf32>, vector<16x16xf32>, vector<16x16xf32> -> vector<16x16xf32>
    %c0_8 = arith.constant 0 : index
    %c0_9 = arith.constant 0 : index
    %8 = vector.load %arg6[%c0_8, %c0_9] : memref<1x16xf32, #tpu.memory_space<vmem>>, vector<1x16xf32>
    %9 = vector.broadcast %8 : vector<1x16xf32> to vector<16x16xf32>
    %10 = arith.addf %7, %9 : vector<16x16xf32>
    %c0_10 = arith.constant 0 : index
    %c0_11 = arith.constant 0 : index
    %11 = vector.load %arg4[%c0_10, %c0_11] : memref<16x16xf32, #tpu.memory_space<vmem>>, vector<16x16xf32>
    %cst_12 = arith.constant dense<0.000000e+00> : vector<16x16xf32>
    %12 = tpu.matmul %0, %11, %cst_12 {dimension_numbers = #tpu.dot_dimension_numbers<[1], [0], [0], [1], [0, 0, 1, 1], [], []>} : vector<16x16xf32>, vector<16x16xf32>, vector<16x16xf32> -> vector<16x16xf32>
    %c0_13 = arith.constant 0 : index
    %c0_14 = arith.constant 0 : index
    %13 = vector.load %arg7[%c0_13, %c0_14] : memref<1x16xf32, #tpu.memory_space<vmem>>, vector<1x16xf32>
    %14 = vector.broadcast %13 : vector<1x16xf32> to vector<16x16xf32>
    %15 = arith.addf %12, %14 : vector<16x16xf32>
    %cst_15 = arith.constant dense<0xFF800000> : vector<16xf32>
    %16 = vector.multi_reduction <maximumf>, %10, %cst_15 [1] : vector<16x16xf32> to vector<16xf32>
    %17 = vector.shape_cast %16 : vector<16xf32> to vector<16x1xf32>
    %cst_16 = arith.constant dense<0x7F800000> : vector<16xf32>
    %18 = vector.multi_reduction <minimumf>, %10, %cst_16 [1] : vector<16x16xf32> to vector<16xf32>
    %19 = vector.shape_cast %18 : vector<16xf32> to vector<16x1xf32>
    %20 = vector.broadcast %17 : vector<16x1xf32> to vector<16x16xf32>
    %21 = arith.mulf %5, %20 : vector<16x16xf32>
    %22 = vector.broadcast %19 : vector<16x1xf32> to vector<16x16xf32>
    %23 = arith.mulf %5, %22 : vector<16x16xf32>
    %24 = arith.maximumf %21, %23 : vector<16x16xf32>
    %cst_17 = arith.constant 0.000000e+00 : f32
    %25 = vector.broadcast %cst_17 : f32 to vector<16x16xf32>
    %cst_18 = arith.constant 0.000000e+00 : f32
    %26 = vector.broadcast %cst_18 : f32 to vector<16x16xf32>
    %27 = vector.extract_strided_slice %10 {offsets = [0, 0], sizes = [16, 1], strides = [1, 1]} : vector<16x16xf32> to vector<16x1xf32>
    %28 = vector.broadcast %27 : vector<16x1xf32> to vector<16x16xf32>
    %29 = arith.mulf %5, %28 : vector<16x16xf32>
    %30 = arith.subf %29, %24 : vector<16x16xf32>
    %31 = math.exp %30 : vector<16x16xf32>
    %32 = vector.extract_strided_slice %15 {offsets = [0, 0], sizes = [16, 1], strides = [1, 1]} : vector<16x16xf32> to vector<16x1xf32>
    %33 = vector.broadcast %32 : vector<16x1xf32> to vector<16x16xf32>
    %34 = arith.mulf %31, %33 : vector<16x16xf32>
    %35 = arith.addf %25, %34 : vector<16x16xf32>
    %36 = arith.addf %26, %31 : vector<16x16xf32>
    %37 = vector.extract_strided_slice %10 {offsets = [0, 1], sizes = [16, 1], strides = [1, 1]} : vector<16x16xf32> to vector<16x1xf32>
    %38 = vector.broadcast %37 : vector<16x1xf32> to vector<16x16xf32>
    %39 = arith.mulf %5, %38 : vector<16x16xf32>
    %40 = arith.subf %39, %24 : vector<16x16xf32>
    %41 = math.exp %40 : vector<16x16xf32>
    %42 = vector.extract_strided_slice %15 {offsets = [0, 1], sizes = [16, 1], strides = [1, 1]} : vector<16x16xf32> to vector<16x1xf32>
    %43 = vector.broadcast %42 : vector<16x1xf32> to vector<16x16xf32>
    %44 = arith.mulf %41, %43 : vector<16x16xf32>
    %45 = arith.addf %35, %44 : vector<16x16xf32>
    %46 = arith.addf %36, %41 : vector<16x16xf32>
    %47 = vector.extract_strided_slice %10 {offsets = [0, 2], sizes = [16, 1], strides = [1, 1]} : vector<16x16xf32> to vector<16x1xf32>
    %48 = vector.broadcast %47 : vector<16x1xf32> to vector<16x16xf32>
    %49 = arith.mulf %5, %48 : vector<16x16xf32>
    %50 = arith.subf %49, %24 : vector<16x16xf32>
    %51 = math.exp %50 : vector<16x16xf32>
    %52 = vector.extract_strided_slice %15 {offsets = [0, 2], sizes = [16, 1], strides = [1, 1]} : vector<16x16xf32> to vector<16x1xf32>
    %53 = vector.broadcast %52 : vector<16x1xf32> to vector<16x16xf32>
    %54 = arith.mulf %51, %53 : vector<16x16xf32>
    %55 = arith.addf %45, %54 : vector<16x16xf32>
    %56 = arith.addf %46, %51 : vector<16x16xf32>
    %57 = vector.extract_strided_slice %10 {offsets = [0, 3], sizes = [16, 1], strides = [1, 1]} : vector<16x16xf32> to vector<16x1xf32>
    %58 = vector.broadcast %57 : vector<16x1xf32> to vector<16x16xf32>
    %59 = arith.mulf %5, %58 : vector<16x16xf32>
    %60 = arith.subf %59, %24 : vector<16x16xf32>
    %61 = math.exp %60 : vector<16x16xf32>
    %62 = vector.extract_strided_slice %15 {offsets = [0, 3], sizes = [16, 1], strides = [1, 1]} : vector<16x16xf32> to vector<16x1xf32>
    %63 = vector.broadcast %62 : vector<16x1xf32> to vector<16x16xf32>
    %64 = arith.mulf %61, %63 : vector<16x16xf32>
    %65 = arith.addf %55, %64 : vector<16x16xf32>
    %66 = arith.addf %56, %61 : vector<16x16xf32>
    %67 = vector.extract_strided_slice %10 {offsets = [0, 4], sizes = [16, 1], strides = [1, 1]} : vector<16x16xf32> to vector<16x1xf32>
    %68 = vector.broadcast %67 : vector<16x1xf32> to vector<16x16xf32>
    %69 = arith.mulf %5, %68 : vector<16x16xf32>
    %70 = arith.subf %69, %24 : vector<16x16xf32>
    %71 = math.exp %70 : vector<16x16xf32>
    %72 = vector.extract_strided_slice %15 {offsets = [0, 4], sizes = [16, 1], strides = [1, 1]} : vector<16x16xf32> to vector<16x1xf32>
    %73 = vector.broadcast %72 : vector<16x1xf32> to vector<16x16xf32>
    %74 = arith.mulf %71, %73 : vector<16x16xf32>
    %75 = arith.addf %65, %74 : vector<16x16xf32>
    %76 = arith.addf %66, %71 : vector<16x16xf32>
    %77 = vector.extract_strided_slice %10 {offsets = [0, 5], sizes = [16, 1], strides = [1, 1]} : vector<16x16xf32> to vector<16x1xf32>
    %78 = vector.broadcast %77 : vector<16x1xf32> to vector<16x16xf32>
    %79 = arith.mulf %5, %78 : vector<16x16xf32>
    %80 = arith.subf %79, %24 : vector<16x16xf32>
    %81 = math.exp %80 : vector<16x16xf32>
    %82 = vector.extract_strided_slice %15 {offsets = [0, 5], sizes = [16, 1], strides = [1, 1]} : vector<16x16xf32> to vector<16x1xf32>
    %83 = vector.broadcast %82 : vector<16x1xf32> to vector<16x16xf32>
    %84 = arith.mulf %81, %83 : vector<16x16xf32>
    %85 = arith.addf %75, %84 : vector<16x16xf32>
    %86 = arith.addf %76, %81 : vector<16x16xf32>
    %87 = vector.extract_strided_slice %10 {offsets = [0, 6], sizes = [16, 1], strides = [1, 1]} : vector<16x16xf32> to vector<16x1xf32>
    %88 = vector.broadcast %87 : vector<16x1xf32> to vector<16x16xf32>
    %89 = arith.mulf %5, %88 : vector<16x16xf32>
    %90 = arith.subf %89, %24 : vector<16x16xf32>
    %91 = math.exp %90 : vector<16x16xf32>
    %92 = vector.extract_strided_slice %15 {offsets = [0, 6], sizes = [16, 1], strides = [1, 1]} : vector<16x16xf32> to vector<16x1xf32>
    %93 = vector.broadcast %92 : vector<16x1xf32> to vector<16x16xf32>
    %94 = arith.mulf %91, %93 : vector<16x16xf32>
    %95 = arith.addf %85, %94 : vector<16x16xf32>
    %96 = arith.addf %86, %91 : vector<16x16xf32>
    %97 = vector.extract_strided_slice %10 {offsets = [0, 7], sizes = [16, 1], strides = [1, 1]} : vector<16x16xf32> to vector<16x1xf32>
    %98 = vector.broadcast %97 : vector<16x1xf32> to vector<16x16xf32>
    %99 = arith.mulf %5, %98 : vector<16x16xf32>
    %100 = arith.subf %99, %24 : vector<16x16xf32>
    %101 = math.exp %100 : vector<16x16xf32>
    %102 = vector.extract_strided_slice %15 {offsets = [0, 7], sizes = [16, 1], strides = [1, 1]} : vector<16x16xf32> to vector<16x1xf32>
    %103 = vector.broadcast %102 : vector<16x1xf32> to vector<16x16xf32>
    %104 = arith.mulf %101, %103 : vector<16x16xf32>
    %105 = arith.addf %95, %104 : vector<16x16xf32>
    %106 = arith.addf %96, %101 : vector<16x16xf32>
    %107 = vector.extract_strided_slice %10 {offsets = [0, 8], sizes = [16, 1], strides = [1, 1]} : vector<16x16xf32> to vector<16x1xf32>
    %108 = vector.broadcast %107 : vector<16x1xf32> to vector<16x16xf32>
    %109 = arith.mulf %5, %108 : vector<16x16xf32>
    %110 = arith.subf %109, %24 : vector<16x16xf32>
    %111 = math.exp %110 : vector<16x16xf32>
    %112 = vector.extract_strided_slice %15 {offsets = [0, 8], sizes = [16, 1], strides = [1, 1]} : vector<16x16xf32> to vector<16x1xf32>
    %113 = vector.broadcast %112 : vector<16x1xf32> to vector<16x16xf32>
    %114 = arith.mulf %111, %113 : vector<16x16xf32>
    %115 = arith.addf %105, %114 : vector<16x16xf32>
    %116 = arith.addf %106, %111 : vector<16x16xf32>
    %117 = vector.extract_strided_slice %10 {offsets = [0, 9], sizes = [16, 1], strides = [1, 1]} : vector<16x16xf32> to vector<16x1xf32>
    %118 = vector.broadcast %117 : vector<16x1xf32> to vector<16x16xf32>
    %119 = arith.mulf %5, %118 : vector<16x16xf32>
    %120 = arith.subf %119, %24 : vector<16x16xf32>
    %121 = math.exp %120 : vector<16x16xf32>
    %122 = vector.extract_strided_slice %15 {offsets = [0, 9], sizes = [16, 1], strides = [1, 1]} : vector<16x16xf32> to vector<16x1xf32>
    %123 = vector.broadcast %122 : vector<16x1xf32> to vector<16x16xf32>
    %124 = arith.mulf %121, %123 : vector<16x16xf32>
    %125 = arith.addf %115, %124 : vector<16x16xf32>
    %126 = arith.addf %116, %121 : vector<16x16xf32>
    %127 = vector.extract_strided_slice %10 {offsets = [0, 10], sizes = [16, 1], strides = [1, 1]} : vector<16x16xf32> to vector<16x1xf32>
    %128 = vector.broadcast %127 : vector<16x1xf32> to vector<16x16xf32>
    %129 = arith.mulf %5, %128 : vector<16x16xf32>
    %130 = arith.subf %129, %24 : vector<16x16xf32>
    %131 = math.exp %130 : vector<16x16xf32>
    %132 = vector.extract_strided_slice %15 {offsets = [0, 10], sizes = [16, 1], strides = [1, 1]} : vector<16x16xf32> to vector<16x1xf32>
    %133 = vector.broadcast %132 : vector<16x1xf32> to vector<16x16xf32>
    %134 = arith.mulf %131, %133 : vector<16x16xf32>
    %135 = arith.addf %125, %134 : vector<16x16xf32>
    %136 = arith.addf %126, %131 : vector<16x16xf32>
    %137 = vector.extract_strided_slice %10 {offsets = [0, 11], sizes = [16, 1], strides = [1, 1]} : vector<16x16xf32> to vector<16x1xf32>
    %138 = vector.broadcast %137 : vector<16x1xf32> to vector<16x16xf32>
    %139 = arith.mulf %5, %138 : vector<16x16xf32>
    %140 = arith.subf %139, %24 : vector<16x16xf32>
    %141 = math.exp %140 : vector<16x16xf32>
    %142 = vector.extract_strided_slice %15 {offsets = [0, 11], sizes = [16, 1], strides = [1, 1]} : vector<16x16xf32> to vector<16x1xf32>
    %143 = vector.broadcast %142 : vector<16x1xf32> to vector<16x16xf32>
    %144 = arith.mulf %141, %143 : vector<16x16xf32>
    %145 = arith.addf %135, %144 : vector<16x16xf32>
    %146 = arith.addf %136, %141 : vector<16x16xf32>
    %147 = vector.extract_strided_slice %10 {offsets = [0, 12], sizes = [16, 1], strides = [1, 1]} : vector<16x16xf32> to vector<16x1xf32>
    %148 = vector.broadcast %147 : vector<16x1xf32> to vector<16x16xf32>
    %149 = arith.mulf %5, %148 : vector<16x16xf32>
    %150 = arith.subf %149, %24 : vector<16x16xf32>
    %151 = math.exp %150 : vector<16x16xf32>
    %152 = vector.extract_strided_slice %15 {offsets = [0, 12], sizes = [16, 1], strides = [1, 1]} : vector<16x16xf32> to vector<16x1xf32>
    %153 = vector.broadcast %152 : vector<16x1xf32> to vector<16x16xf32>
    %154 = arith.mulf %151, %153 : vector<16x16xf32>
    %155 = arith.addf %145, %154 : vector<16x16xf32>
    %156 = arith.addf %146, %151 : vector<16x16xf32>
    %157 = vector.extract_strided_slice %10 {offsets = [0, 13], sizes = [16, 1], strides = [1, 1]} : vector<16x16xf32> to vector<16x1xf32>
    %158 = vector.broadcast %157 : vector<16x1xf32> to vector<16x16xf32>
    %159 = arith.mulf %5, %158 : vector<16x16xf32>
    %160 = arith.subf %159, %24 : vector<16x16xf32>
    %161 = math.exp %160 : vector<16x16xf32>
    %162 = vector.extract_strided_slice %15 {offsets = [0, 13], sizes = [16, 1], strides = [1, 1]} : vector<16x16xf32> to vector<16x1xf32>
    %163 = vector.broadcast %162 : vector<16x1xf32> to vector<16x16xf32>
    %164 = arith.mulf %161, %163 : vector<16x16xf32>
    %165 = arith.addf %155, %164 : vector<16x16xf32>
    %166 = arith.addf %156, %161 : vector<16x16xf32>
    %167 = vector.extract_strided_slice %10 {offsets = [0, 14], sizes = [16, 1], strides = [1, 1]} : vector<16x16xf32> to vector<16x1xf32>
    %168 = vector.broadcast %167 : vector<16x1xf32> to vector<16x16xf32>
    %169 = arith.mulf %5, %168 : vector<16x16xf32>
    %170 = arith.subf %169, %24 : vector<16x16xf32>
    %171 = math.exp %170 : vector<16x16xf32>
    %172 = vector.extract_strided_slice %15 {offsets = [0, 14], sizes = [16, 1], strides = [1, 1]} : vector<16x16xf32> to vector<16x1xf32>
    %173 = vector.broadcast %172 : vector<16x1xf32> to vector<16x16xf32>
    %174 = arith.mulf %171, %173 : vector<16x16xf32>
    %175 = arith.addf %165, %174 : vector<16x16xf32>
    %176 = arith.addf %166, %171 : vector<16x16xf32>
    %177 = vector.extract_strided_slice %10 {offsets = [0, 15], sizes = [16, 1], strides = [1, 1]} : vector<16x16xf32> to vector<16x1xf32>
    %178 = vector.broadcast %177 : vector<16x1xf32> to vector<16x16xf32>
    %179 = arith.mulf %5, %178 : vector<16x16xf32>
    %180 = arith.subf %179, %24 : vector<16x16xf32>
    %181 = math.exp %180 : vector<16x16xf32>
    %182 = vector.extract_strided_slice %15 {offsets = [0, 15], sizes = [16, 1], strides = [1, 1]} : vector<16x16xf32> to vector<16x1xf32>
    %183 = vector.broadcast %182 : vector<16x1xf32> to vector<16x16xf32>
    %184 = arith.mulf %181, %183 : vector<16x16xf32>
    %185 = arith.addf %175, %184 : vector<16x16xf32>
    %186 = arith.addf %176, %181 : vector<16x16xf32>
    %187 = arith.divf %185, %186 : vector<16x16xf32>
    %c0_19 = arith.constant 0 : index
    %c0_20 = arith.constant 0 : index
    %188 = vector.load %arg8[%c0_19, %c0_20] : memref<16x16xf32, #tpu.memory_space<vmem>>, vector<16x16xf32>
    %cst_21 = arith.constant dense<0.000000e+00> : vector<16x16xf32>
    %189 = tpu.matmul %187, %188, %cst_21 {dimension_numbers = #tpu.dot_dimension_numbers<[1], [0], [0], [1], [0, 0, 1, 1], [], []>} : vector<16x16xf32>, vector<16x16xf32>, vector<16x16xf32> -> vector<16x16xf32>
    %c0_22 = arith.constant 0 : index
    %c0_23 = arith.constant 0 : index
    %190 = vector.load %arg9[%c0_22, %c0_23] : memref<1x16xf32, #tpu.memory_space<vmem>>, vector<1x16xf32>
    %191 = vector.broadcast %190 : vector<1x16xf32> to vector<16x16xf32>
    %192 = arith.addf %189, %191 : vector<16x16xf32>
    %193 = arith.addf %192, %0 : vector<16x16xf32>
    %c0_24 = arith.constant 0 : index
    %c0_25 = arith.constant 0 : index
    %194 = vector.load %arg10[%c0_24, %c0_25] : memref<16x32xf32, #tpu.memory_space<vmem>>, vector<16x32xf32>
    %cst_26 = arith.constant dense<0.000000e+00> : vector<16x32xf32>
    %195 = tpu.matmul %193, %194, %cst_26 {dimension_numbers = #tpu.dot_dimension_numbers<[1], [0], [0], [1], [0, 0, 1, 1], [], []>} : vector<16x16xf32>, vector<16x32xf32>, vector<16x32xf32> -> vector<16x32xf32>
    %c0_27 = arith.constant 0 : index
    %c0_28 = arith.constant 0 : index
    %196 = vector.load %arg11[%c0_27, %c0_28] : memref<1x32xf32, #tpu.memory_space<vmem>>, vector<1x32xf32>
    %197 = vector.broadcast %196 : vector<1x32xf32> to vector<16x32xf32>
    %198 = arith.addf %195, %197 : vector<16x32xf32>
    %c0_29 = arith.constant 0 : index
    %c0_30 = arith.constant 0 : index
    %199 = vector.load %arg12[%c0_29, %c0_30] : memref<16x32xf32, #tpu.memory_space<vmem>>, vector<16x32xf32>
    tpu.vector_store %arg12[%c0_29, %c0_30], %198 {strides = array<i32>} : memref<16x32xf32, #tpu.memory_space<vmem>>, vector<16x32xf32>,
    return
  }
  func.func @transform_0(%arg0: i32) -> (i32, i32) {
    %c0_i32 = arith.constant 0 : i32
    %c0_i32_0 = arith.constant 0 : i32
    return %arg0, %c0_i32 : i32, i32
  }
  func.func @transform_1(%arg0: i32) -> (i32, i32) {
    %c0_i32 = arith.constant 0 : i32
    %c0_i32_0 = arith.constant 0 : i32
    %c0_i32_1 = arith.constant 0 : i32
    return %c0_i32, %c0_i32_0 : i32, i32
  }
  func.func @transform_2(%arg0: i32) -> (i32, i32) {
    %c0_i32 = arith.constant 0 : i32
    %c0_i32_0 = arith.constant 0 : i32
    %c0_i32_1 = arith.constant 0 : i32
    return %c0_i32, %c0_i32_0 : i32, i32
  }
  func.func @transform_3(%arg0: i32) -> (i32, i32) {
    %c0_i32 = arith.constant 0 : i32
    %c0_i32_0 = arith.constant 0 : i32
    %c0_i32_1 = arith.constant 0 : i32
    return %c0_i32, %c0_i32_0 : i32, i32
  }
  func.func @transform_4(%arg0: i32) -> (i32, i32) {
    %c0_i32 = arith.constant 0 : i32
    %c0_i32_0 = arith.constant 0 : i32
    %c0_i32_1 = arith.constant 0 : i32
    return %c0_i32, %c0_i32_0 : i32, i32
  }
  func.func @transform_5(%arg0: i32) -> (i32, i32) {
    %c0_i32 = arith.constant 0 : i32
    %c0_i32_0 = arith.constant 0 : i32
    %c0_i32_1 = arith.constant 0 : i32
    return %c0_i32, %c0_i32_0 : i32, i32
  }
  func.func @transform_6(%arg0: i32) -> (i32, i32) {
    %c0_i32 = arith.constant 0 : i32
    %c0_i32_0 = arith.constant 0 : i32
    %c0_i32_1 = arith.constant 0 : i32
    return %c0_i32, %c0_i32_0 : i32, i32
  }
  func.func @transform_7(%arg0: i32) -> (i32, i32) {
    %c0_i32 = arith.constant 0 : i32
    %c0_i32_0 = arith.constant 0 : i32
    %c0_i32_1 = arith.constant 0 : i32
    return %c0_i32, %c0_i32_0 : i32, i32
  }
  func.func @transform_8(%arg0: i32) -> (i32, i32) {
    %c0_i32 = arith.constant 0 : i32
    %c0_i32_0 = arith.constant 0 : i32
    %c0_i32_1 = arith.constant 0 : i32
    return %c0_i32, %c0_i32_0 : i32, i32
  }
  func.func @transform_9(%arg0: i32) -> (i32, i32) {
    %c0_i32 = arith.constant 0 : i32
    %c0_i32_0 = arith.constant 0 : i32
    %c0_i32_1 = arith.constant 0 : i32
    return %c0_i32, %c0_i32_0 : i32, i32
  }
  func.func @transform_10(%arg0: i32) -> (i32, i32) {
    %c0_i32 = arith.constant 0 : i32
    %c0_i32_0 = arith.constant 0 : i32
    %c0_i32_1 = arith.constant 0 : i32
    return %c0_i32, %c0_i32_0 : i32, i32
  }
  func.func @transform_11(%arg0: i32) -> (i32, i32) {
    %c0_i32 = arith.constant 0 : i32
    %c0_i32_0 = arith.constant 0 : i32
    return %arg0, %c0_i32 : i32, i32
  }
}

</mosaic_0001>

<llo_original>
// kernel: tpu_custom_call.1
$region0: #{tpu_custom_call.1}
  #allocation0 [shape = 'u32[]', space=smem, size = 0x4, offset = 0x4, fixed_abs, tag = 'smem constant byte address 0x4 - core index']
  #allocation1 [shape = 'u32[144,128]{1,0:T(1,128)}', space=vmem, size = 0x12000, scoped, tag = 'internal scratch']
  %s0 = inlined_call_operand.hbm [shape: f32[16,16], index: 0, kind: input, shape index: {}]
  %s1 = inlined_call_operand.hbm [shape: f32[16,16], index: 1, kind: input, shape index: {}]
  %s2 = inlined_call_operand.hbm [shape: f32[16,16], index: 2, kind: input, shape index: {}]
  %s3 = inlined_call_operand.hbm [shape: f32[16,16], index: 3, kind: input, shape index: {}]
  %s4 = inlined_call_operand.vmem [shape: f32[1,16], index: 4, kind: input, shape index: {}]
  %s5 = inlined_call_operand.vmem [shape: f32[1,16], index: 5, kind: input, shape index: {}]
  %s6 = inlined_call_operand.hbm [shape: f32[1,16], index: 6, kind: input, shape index: {}]
  %s7 = inlined_call_operand.vmem [shape: f32[16,16], index: 7, kind: input, shape index: {}]
  %s8 = inlined_call_operand.hbm [shape: f32[1,16], index: 8, kind: input, shape index: {}]
  %s9 = inlined_call_operand.vmem [shape: f32[16,32], index: 9, kind: input, shape index: {}]
  %s10 = inlined_call_operand.vmem [shape: f32[1,32], index: 10, kind: input, shape index: {}]
  %s11 = inlined_call_operand.hbm [shape: f32[16,32], index: 11, kind: output, shape index: {}]
  %s12 = sld [smem:[#allocation0]]
  $region78: #{tpu_custom_call.1} parent=0
    _
  %s14 = ssub.s32 1, %s12
  %s15 = scalar_select 0, %s14, %s12
  $region1: #{tpu_custom_call.1} parent=0
    #allocation2 [shape = 'u8[8192]{0}', space=vmem, size = 0x2000, scoped, tag = 'input window, operand 0, single buffered']
    #allocation3 [shape = 's32[1]{0}', space=sflag, size = 0x4, scoped, tag = 'scoped memory for tpu_custom_call.1']
    #allocation4 [shape = 's32[1]{0}', space=sflag, size = 0x4, scoped, tag = 'scoped memory for tpu_custom_call.1']
    #allocation5 [shape = 'u8[8192]{0}', space=vmem, size = 0x2000, scoped, tag = 'input window, operand 1, single buffered']
    #allocation6 [shape = 's32[1]{0}', space=sflag, size = 0x4, scoped, tag = 'scoped memory for tpu_custom_call.1']
    #allocation7 [shape = 'u8[8192]{0}', space=vmem, size = 0x2000, scoped, tag = 'input window, operand 2, single buffered']
    #allocation8 [shape = 'u8[8192]{0}', space=vmem, size = 0x2000, scoped, tag = 'input window, operand 3, single buffered']
    #allocation9 [shape = 's32[1]{0}', space=sflag, size = 0x4, scoped, tag = 'scoped memory for tpu_custom_call.1']
    #allocation10 [shape = 'u8[512]{0}', space=vmem, size = 0x400, scoped, tag = 'input window, operand 6, single buffered']
    #allocation11 [shape = 'u8[512]{0}', space=vmem, size = 0x400, scoped, tag = 'input window, operand 8, single buffered']
    #allocation12 [shape = 's32[1]{0}', space=sflag, size = 0x4, scoped, tag = 'scoped memory for tpu_custom_call.1']
    #allocation13 [shape = 'u8[8192]{0}', space=vmem, size = 0x2000, scoped, tag = 'output window, operand 0, single buffered']
    %16 = vsyncpa [#allocation3], 0
    %17 = vsyncpa [#allocation6], 0
    %18 = vsyncpa [#allocation9], 0
    %19 = vsyncpa [#allocation12], 0
    %20 = vsyncpa [#allocation4], 0
    // Predicated region
    $region2: #{tpu_custom_call.1} parent=1 // pred_check
      _
    $region3: #{tpu_custom_call.1} parent=1 // pred_check_branch
      %22 = sbr.rel (0) target = $region5
    $region4: #{tpu_custom_call.1} parent=1 // pred_region
      %s24 = ssub.s32 256, 256
      %25 = vsyncadd [#allocation3], %s24
      %s26 = sshll.u32 [#allocation2], 4
      %s27 = int_to_ptr.vmem [resolvable:$true] %s26
      %32 = dma.hbm_to_vmem [thread:$0]  %s0, 256, %s27, [#allocation3], 128, 128, 8
    $region5: #{tpu_custom_call.1} parent=1 // pred_fallthru
      _
    // Predicated region
    $region6: #{tpu_custom_call.1} parent=1 // pred_check
      _
    $region7: #{tpu_custom_call.1} parent=1 // pred_check_branch
      %34 = sbr.rel (0) target = $region9
    $region8: #{tpu_custom_call.1} parent=1 // pred_region
      %s36 = ssub.s32 256, 256
      %37 = vsyncadd [#allocation6], %s36
      %s38 = sshll.u32 [#allocation5], 4
      %s39 = int_to_ptr.vmem [resolvable:$true] %s38
      %44 = dma.hbm_to_vmem [thread:$0]  %s1, 256, %s39, [#allocation6], 128, 128, 8
    $region9: #{tpu_custom_call.1} parent=1 // pred_fallthru
      _
    // Predicated region
    $region10: #{tpu_custom_call.1} parent=1 // pred_check
      _
    $region11: #{tpu_custom_call.1} parent=1 // pred_check_branch
      %46 = sbr.rel (0) target = $region13
    $region12: #{tpu_custom_call.1} parent=1 // pred_region
      %s48 = ssub.s32 256, 256
      %49 = vsyncadd [#allocation6], %s48
      %s50 = sshll.u32 [#allocation7], 4
      %s51 = int_to_ptr.vmem [resolvable:$true] %s50
      %56 = dma.hbm_to_vmem [thread:$0]  %s2, 256, %s51, [#allocation6], 128, 128, 8
    $region13: #{tpu_custom_call.1} parent=1 // pred_fallthru
      _
    // Predicated region
    $region14: #{tpu_custom_call.1} parent=1 // pred_check
      _
    $region15: #{tpu_custom_call.1} parent=1 // pred_check_branch
      %58 = sbr.rel (0) target = $region17
    $region16: #{tpu_custom_call.1} parent=1 // pred_region
      %s60 = ssub.s32 256, 256
      %61 = vsyncadd [#allocation9], %s60
      %s62 = sshll.u32 [#allocation8], 4
      %s63 = int_to_ptr.vmem [resolvable:$true] %s62
      %68 = dma.hbm_to_vmem [thread:$0]  %s3, 256, %s63, [#allocation9], 128, 128, 8
    $region17: #{tpu_custom_call.1} parent=1 // pred_fallthru
      _
    // Predicated region
    $region18: #{tpu_custom_call.1} parent=1 // pred_check
      _
    $region19: #{tpu_custom_call.1} parent=1 // pred_check_branch
      %70 = sbr.rel (0) target = $region21
    $region20: #{tpu_custom_call.1} parent=1 // pred_region
      _
    $region21: #{tpu_custom_call.1} parent=1 // pred_fallthru
      _
    // Predicated region
    $region22: #{tpu_custom_call.1} parent=1 // pred_check
      _
    $region23: #{tpu_custom_call.1} parent=1 // pred_check_branch
      %72 = sbr.rel (0) target = $region25
    $region24: #{tpu_custom_call.1} parent=1 // pred_region
      _
    $region25: #{tpu_custom_call.1} parent=1 // pred_fallthru
      _
    // Predicated region
    $region26: #{tpu_custom_call.1} parent=1 // pred_check
      _
    $region27: #{tpu_custom_call.1} parent=1 // pred_check_branch
      %74 = sbr.rel (0) target = $region29
    $region28: #{tpu_custom_call.1} parent=1 // pred_region
      %s76 = ssub.s32 16, 16
      %77 = vsyncadd [#allocation9], %s76
      %s79 = sshll.u32 [#allocation10], 4
      %s80 = int_to_ptr.vmem [resolvable:$true] %s79
      %82 = dma.hbm_to_vmem [thread:$0]  %s6, 16, %s80, [#allocation9]
    $region29: #{tpu_custom_call.1} parent=1 // pred_fallthru
      _
    // Predicated region
    $region30: #{tpu_custom_call.1} parent=1 // pred_check
      _
    $region31: #{tpu_custom_call.1} parent=1 // pred_check_branch
      %84 = sbr.rel (0) target = $region33
    $region32: #{tpu_custom_call.1} parent=1 // pred_region
      _
    $region33: #{tpu_custom_call.1} parent=1 // pred_fallthru
      _
    // Predicated region
    $region34: #{tpu_custom_call.1} parent=1 // pred_check
      _
    $region35: #{tpu_custom_call.1} parent=1 // pred_check_branch
      %86 = sbr.rel (0) target = $region37
    $region36: #{tpu_custom_call.1} parent=1 // pred_region
      %s88 = ssub.s32 16, 16
      %89 = vsyncadd [#allocation12], %s88
      %s91 = sshll.u32 [#allocation11], 4
      %s92 = int_to_ptr.vmem [resolvable:$true] %s91
      %94 = dma.hbm_to_vmem [thread:$0]  %s8, 16, %s92, [#allocation12]
    $region37: #{tpu_custom_call.1} parent=1 // pred_fallthru
      _
    // Predicated region
    $region38: #{tpu_custom_call.1} parent=1 // pred_check
      _
    $region39: #{tpu_custom_call.1} parent=1 // pred_check_branch
      %96 = sbr.rel (0) target = $region41
    $region40: #{tpu_custom_call.1} parent=1 // pred_region
      _
    $region41: #{tpu_custom_call.1} parent=1 // pred_fallthru
      _
    // Predicated region
    $region42: #{tpu_custom_call.1} parent=1 // pred_check
      _
    $region43: #{tpu_custom_call.1} parent=1 // pred_check_branch
      %98 = sbr.rel (0) target = $region45
    $region44: #{tpu_custom_call.1} parent=1 // pred_region
      _
    $region45: #{tpu_custom_call.1} parent=1 // pred_fallthru
      _
    // Predicated region
    $region46: #{tpu_custom_call.1} parent=1 // pred_check
      _
    $region47: #{tpu_custom_call.1} parent=1 // pred_check_branch
      %100 = sbr.rel (0) target = $region49
    $region48: #{tpu_custom_call.1} parent=1 // pred_region
      %101 = dma.done [#allocation3], 256
    $region49: #{tpu_custom_call.1} parent=1 // pred_fallthru
      _
    // Predicated region
    $region50: #{tpu_custom_call.1} parent=1 // pred_check
      _
    $region51: #{tpu_custom_call.1} parent=1 // pred_check_branch
      %103 = sbr.rel (0) target = $region53
    $region52: #{tpu_custom_call.1} parent=1 // pred_region
      %104 = dma.done [#allocation6], 256
    $region53: #{tpu_custom_call.1} parent=1 // pred_fallthru
      _
    // Predicated region
    $region54: #{tpu_custom_call.1} parent=1 // pred_check
      _
    $region55: #{tpu_custom_call.1} parent=1 // pred_check_branch
      %106 = sbr.rel (0) target = $region57
    $region56: #{tpu_custom_call.1} parent=1 // pred_region
      %107 = dma.done [#allocation6], 256
    $region57: #{tpu_custom_call.1} parent=1 // pred_fallthru
      _
    // Predicated region
    $region58: #{tpu_custom_call.1} parent=1 // pred_check
      _
    $region59: #{tpu_custom_call.1} parent=1 // pred_check_branch
      %109 = sbr.rel (0) target = $region61
    $region60: #{tpu_custom_call.1} parent=1 // pred_region
      %110 = dma.done [#allocation9], 256
    $region61: #{tpu_custom_call.1} parent=1 // pred_fallthru
      _
    // Predicated region
    $region62: #{tpu_custom_call.1} parent=1 // pred_check
      _
    $region63: #{tpu_custom_call.1} parent=1 // pred_check_branch
      %112 = sbr.rel (0) target = $region65
    $region64: #{tpu_custom_call.1} parent=1 // pred_region
      %113 = dma.done [#allocation9], 16
    $region65: #{tpu_custom_call.1} parent=1 // pred_fallthru
      _
    // Predicated region
    $region66: #{tpu_custom_call.1} parent=1 // pred_check
      _
    $region67: #{tpu_custom_call.1} parent=1 // pred_check_branch
      %115 = sbr.rel (0) target = $region69
    $region68: #{tpu_custom_call.1} parent=1 // pred_region
      %116 = dma.done [#allocation12], 16
    $region69: #{tpu_custom_call.1} parent=1 // pred_fallthru
      _
    %v117 = vld [vmem:[#allocation2] sm:$0xff]
    %v118 = vld [vmem:[#allocation2 + $0x8] sm:$0xff]
    %v119 = vld [vmem:[#allocation5] sm:$0xff]
    %v120 = vld [vmem:[#allocation5 + $0x8] sm:$0xff]
    %v121 = vld [vmem:[%s4] sm:$0x1]
    %v123 = vlaneseq
    %v124 = vshrl.u32 %v123, 7
    %v125 = vsub.s32 0, %v124
    %v126 = vrot.slane %v121, %v125
    %vm128 = vcmask 130048
    %v130 = vsel %vm128, %v117, 0
    %v133 = vsel %vm128, %v118, 0
    %135 = vmatprep.subr.mxu0 0.0
    %136 = vmatpush1.msra.mxu0 %v119
    %137 = vmatprep.subr.mxu0 0.0
    %138 = vmatpush1.msra.mxu0 %v120
    %139 = vmatprep.subr.mxu0 0.0
    %140 = vmatpush1.msra.mxu0 0.0
    %141 = vmatprep.subr.mxu0 0.0
    %142 = vmatpush1.msra.mxu0 0.0
    %143 = vmatprep.subr.mxu0 0.0
    %144 = vmatpush1.msra.mxu0 0.0
    %145 = vmatprep.subr.mxu0 0.0
    %146 = vmatpush1.msra.mxu0 0.0
    %147 = vmatprep.subr.mxu0 0.0
    %148 = vmatpush1.msra.mxu0 0.0
    %149 = vmatprep.subr.mxu0 0.0
    %150 = vmatpush1.msra.mxu0 0.0
    %151 = vmatprep.subr.mxu0 0.0
    %152 = vmatpush1.msra.mxu0 0.0
    %153 = vmatprep.subr.mxu0 0.0
    %154 = vmatpush1.msra.mxu0 0.0
    %155 = vmatprep.subr.mxu0 0.0
    %156 = vmatpush1.msra.mxu0 0.0
    %157 = vmatprep.subr.mxu0 0.0
    %158 = vmatpush1.msra.mxu0 0.0
    %159 = vmatprep.subr.mxu0 0.0
    %160 = vmatpush1.msra.mxu0 0.0
    %161 = vmatprep.subr.mxu0 0.0
    %162 = vmatpush1.msra.mxu0 0.0
    %163 = vmatprep.subr.mxu0 0.0
    %164 = vmatpush1.msra.mxu0 0.0
    %165 = vmatprep.subr.mxu0 0.0
    %166 = vmatpush1.msra.mxu0 0.0
    %167 = vmatprep.subr.mxu0 0.0
    %168 = vmatpush1.msra.mxu0 0.0
    %169 = vmatprep.subr.mxu0 0.0
    %170 = vmatpush1.msra.mxu0 0.0
    %171 = vmatprep.subr.mxu0 0.0
    %172 = vmatpush1.msra.mxu0 0.0
    %173 = vmatprep.subr.mxu0 0.0
    %174 = vmatpush1.msra.mxu0 0.0
    %175 = vmatprep.subr.mxu0 0.0
    %176 = vmatpush1.msra.mxu0 0.0
    %177 = vmatprep.subr.mxu0 0.0
    %178 = vmatpush1.msra.mxu0 0.0
    %179 = vmatprep.subr.mxu0 0.0
    %180 = vmatpush1.msra.mxu0 0.0
    %181 = vmatprep.subr.mxu0 0.0
    %182 = vmatpush1.msra.mxu0 0.0
    %183 = vmatprep.subr.mxu0 0.0
    %184 = vmatpush1.msra.mxu0 0.0
    %185 = vmatprep.subr.mxu0 0.0
    %186 = vmatpush1.msra.mxu0 0.0
    %187 = vmatprep.subr.mxu0 0.0
    %188 = vmatpush1.msra.mxu0 0.0
    %189 = vmatprep.subr.mxu0 0.0
    %190 = vmatpush1.msra.mxu0 0.0
    %191 = vmatprep.subr.mxu0 0.0
    %192 = vmatpush1.msra.mxu0 0.0
    %193 = vmatprep.subr.mxu0 0.0
    %194 = vmatpush1.msra.mxu0 0.0
    %195 = vmatprep.subr.mxu0 0.0
    %196 = vmatpush1.msra.mxu0 0.0
    %197 = vmatprep.subr.mxu0 0.0
    %198 = vmatpush1.msra.mxu0 0.0
    %199 = vmatprep.mubr.f32.mxu0 0.0
    %200 = vmatmul.mubr.f32.gmra.mrb[0].mxu0 %v130
    %v201 = vpop.f32.mrb[0].mxu0
    %v202 = vadd.f32 %v126, %v201
    %v203 = vpop.f32.mrb[0].mxu0
    %204 = vmatprep.mubr.f32.mxu0 0.0
    %205 = vmatmul.mubr.f32.gmra.mrb[0].mxu0 %v133
    %v206 = vpop.f32.mrb[0].mxu0
    %v207 = vadd.f32 %v126, %v206
    %v208 = vpop.f32.mrb[0].mxu0
    %209 = vdwg.mxu0
    %v210 = vld [vmem:[#allocation7] sm:$0xff]
    %v211 = vld [vmem:[#allocation7 + $0x8] sm:$0xff]
    %v212 = vld [vmem:[%s5] sm:$0x1]
    %v214 = vlaneseq
    %v215 = vshrl.u32 %v214, 7
    %v216 = vsub.s32 0, %v215
    %v217 = vrot.slane %v212, %v216
    %219 = vmatprep.subr.mxu0 0.0
    %220 = vmatpush1.msra.mxu0 %v210
    %221 = vmatprep.subr.mxu0 0.0
    %222 = vmatpush1.msra.mxu0 %v211
    %223 = vmatprep.subr.mxu0 0.0
    %224 = vmatpush1.msra.mxu0 0.0
    %225 = vmatprep.subr.mxu0 0.0
    %226 = vmatpush1.msra.mxu0 0.0
    %227 = vmatprep.subr.mxu0 0.0
    %228 = vmatpush1.msra.mxu0 0.0
    %229 = vmatprep.subr.mxu0 0.0
    %230 = vmatpush1.msra.mxu0 0.0
    %231 = vmatprep.subr.mxu0 0.0
    %232 = vmatpush1.msra.mxu0 0.0
    %233 = vmatprep.subr.mxu0 0.0
    %234 = vmatpush1.msra.mxu0 0.0
    %235 = vmatprep.subr.mxu0 0.0
    %236 = vmatpush1.msra.mxu0 0.0
    %237 = vmatprep.subr.mxu0 0.0
    %238 = vmatpush1.msra.mxu0 0.0
    %239 = vmatprep.subr.mxu0 0.0
    %240 = vmatpush1.msra.mxu0 0.0
    %241 = vmatprep.subr.mxu0 0.0
    %242 = vmatpush1.msra.mxu0 0.0
    %243 = vmatprep.subr.mxu0 0.0
    %244 = vmatpush1.msra.mxu0 0.0
    %245 = vmatprep.subr.mxu0 0.0
    %246 = vmatpush1.msra.mxu0 0.0
    %247 = vmatprep.subr.mxu0 0.0
    %248 = vmatpush1.msra.mxu0 0.0
    %249 = vmatprep.subr.mxu0 0.0
    %250 = vmatpush1.msra.mxu0 0.0
    %251 = vmatprep.subr.mxu0 0.0
    %252 = vmatpush1.msra.mxu0 0.0
    %253 = vmatprep.subr.mxu0 0.0
    %254 = vmatpush1.msra.mxu0 0.0
    %255 = vmatprep.subr.mxu0 0.0
    %256 = vmatpush1.msra.mxu0 0.0
    %257 = vmatprep.subr.mxu0 0.0
    %258 = vmatpush1.msra.mxu0 0.0
    %259 = vmatprep.subr.mxu0 0.0
    %260 = vmatpush1.msra.mxu0 0.0
    %261 = vmatprep.subr.mxu0 0.0
    %262 = vmatpush1.msra.mxu0 0.0
    %263 = vmatprep.subr.mxu0 0.0
    %264 = vmatpush1.msra.mxu0 0.0
    %265 = vmatprep.subr.mxu0 0.0
    %266 = vmatpush1.msra.mxu0 0.0
    %267 = vmatprep.subr.mxu0 0.0
    %268 = vmatpush1.msra.mxu0 0.0
    %269 = vmatprep.subr.mxu0 0.0
    %270 = vmatpush1.msra.mxu0 0.0
    %271 = vmatprep.subr.mxu0 0.0
    %272 = vmatpush1.msra.mxu0 0.0
    %273 = vmatprep.subr.mxu0 0.0
    %274 = vmatpush1.msra.mxu0 0.0
    %275 = vmatprep.subr.mxu0 0.0
    %276 = vmatpush1.msra.mxu0 0.0
    %277 = vmatprep.subr.mxu0 0.0
    %278 = vmatpush1.msra.mxu0 0.0
    %279 = vmatprep.subr.mxu0 0.0
    %280 = vmatpush1.msra.mxu0 0.0
    %281 = vmatprep.subr.mxu0 0.0
    %282 = vmatpush1.msra.mxu0 0.0
    %283 = vmatprep.mubr.f32.mxu0 0.0
    %284 = vmatmul.mubr.f32.gmra.mrb[0].mxu0 %v130
    %v285 = vpop.f32.mrb[0].mxu0
    %v286 = vadd.f32 %v217, %v285
    %v287 = vpop.f32.mrb[0].mxu0
    %288 = vmatprep.mubr.f32.mxu0 0.0
    %289 = vmatmul.mubr.f32.gmra.mrb[0].mxu0 %v133
    %v290 = vpop.f32.mrb[0].mxu0
    %v291 = vadd.f32 %v217, %v290
    %v292 = vpop.f32.mrb[0].mxu0
    %293 = vdwg.mxu0
    %v294 = vld [vmem:[#allocation8] sm:$0xff]
    %v295 = vld [vmem:[#allocation8 + $0x8] sm:$0xff]
    %v296 = vld [vmem:[#allocation10] sm:$0x1]
    %v298 = vlaneseq
    %v299 = vshrl.u32 %v298, 7
    %v300 = vsub.s32 0, %v299
    %v301 = vrot.slane %v296, %v300
    %303 = vmatprep.subr.mxu0 0.0
    %304 = vmatpush1.msra.mxu0 %v294
    %305 = vmatprep.subr.mxu0 0.0
    %306 = vmatpush1.msra.mxu0 %v295
    %307 = vmatprep.subr.mxu0 0.0
    %308 = vmatpush1.msra.mxu0 0.0
    %309 = vmatprep.subr.mxu0 0.0
    %310 = vmatpush1.msra.mxu0 0.0
    %311 = vmatprep.subr.mxu0 0.0
    %312 = vmatpush1.msra.mxu0 0.0
    %313 = vmatprep.subr.mxu0 0.0
    %314 = vmatpush1.msra.mxu0 0.0
    %315 = vmatprep.subr.mxu0 0.0
    %316 = vmatpush1.msra.mxu0 0.0
    %317 = vmatprep.subr.mxu0 0.0
    %318 = vmatpush1.msra.mxu0 0.0
    %319 = vmatprep.subr.mxu0 0.0
    %320 = vmatpush1.msra.mxu0 0.0
    %321 = vmatprep.subr.mxu0 0.0
    %322 = vmatpush1.msra.mxu0 0.0
    %323 = vmatprep.subr.mxu0 0.0
    %324 = vmatpush1.msra.mxu0 0.0
    %325 = vmatprep.subr.mxu0 0.0
    %326 = vmatpush1.msra.mxu0 0.0
    %327 = vmatprep.subr.mxu0 0.0
    %328 = vmatpush1.msra.mxu0 0.0
    %329 = vmatprep.subr.mxu0 0.0
    %330 = vmatpush1.msra.mxu0 0.0
    %331 = vmatprep.subr.mxu0 0.0
    %332 = vmatpush1.msra.mxu0 0.0
    %333 = vmatprep.subr.mxu0 0.0
    %334 = vmatpush1.msra.mxu0 0.0
    %335 = vmatprep.subr.mxu0 0.0
    %336 = vmatpush1.msra.mxu0 0.0
    %337 = vmatprep.subr.mxu0 0.0
    %338 = vmatpush1.msra.mxu0 0.0
    %339 = vmatprep.subr.mxu0 0.0
    %340 = vmatpush1.msra.mxu0 0.0
    %341 = vmatprep.subr.mxu0 0.0
    %342 = vmatpush1.msra.mxu0 0.0
    %343 = vmatprep.subr.mxu0 0.0
    %344 = vmatpush1.msra.mxu0 0.0
    %345 = vmatprep.subr.mxu0 0.0
    %346 = vmatpush1.msra.mxu0 0.0
    %347 = vmatprep.subr.mxu0 0.0
    %348 = vmatpush1.msra.mxu0 0.0
    %349 = vmatprep.subr.mxu0 0.0
    %350 = vmatpush1.msra.mxu0 0.0
    %351 = vmatprep.subr.mxu0 0.0
    %352 = vmatpush1.msra.mxu0 0.0
    %353 = vmatprep.subr.mxu0 0.0
    %354 = vmatpush1.msra.mxu0 0.0
    %355 = vmatprep.subr.mxu0 0.0
    %356 = vmatpush1.msra.mxu0 0.0
    %357 = vmatprep.subr.mxu0 0.0
    %358 = vmatpush1.msra.mxu0 0.0
    %359 = vmatprep.subr.mxu0 0.0
    %360 = vmatpush1.msra.mxu0 0.0
    %361 = vmatprep.subr.mxu0 0.0
    %362 = vmatpush1.msra.mxu0 0.0
    %363 = vmatprep.subr.mxu0 0.0
    %364 = vmatpush1.msra.mxu0 0.0
    %365 = vmatprep.subr.mxu0 0.0
    %366 = vmatpush1.msra.mxu0 0.0
    %367 = vmatprep.mubr.f32.mxu0 0.0
    %368 = vmatmul.mubr.f32.gmra.mrb[0].mxu0 %v130
    %v369 = vpop.f32.mrb[0].mxu0
    %v370 = vadd.f32 %v301, %v369
    %v371 = vpop.f32.mrb[0].mxu0
    %372 = vmatprep.mubr.f32.mxu0 0.0
    %373 = vmatmul.mubr.f32.gmra.mrb[0].mxu0 %v133
    %v374 = vpop.f32.mrb[0].mxu0
    %v375 = vadd.f32 %v301, %v374
    %v376 = vpop.f32.mrb[0].mxu0
    %377 = vdwg.mxu0
    %v378 = vsel %vm128, %v286, -inf
    %379 = vmax.xlane.f32.xlu0 %v378
    %v380 = vpop.xlane.xlu0 %379
    %v381 = vsel %vm128, %v291, -inf
    %382 = vmax.xlane.f32.xlu0 %v381
    %v383 = vpop.xlane.xlu0 %382
    %v384 = vsel %vm128, %v286, inf
    %385 = vmin.xlane.f32.xlu0 %v384
    %v386 = vpop.xlane.xlu0 %385
    %v387 = vsel %vm128, %v291, inf
    %388 = vmin.xlane.f32.xlu0 %v387
    %v389 = vpop.xlane.xlu0 %388
    %v390 = vmul.f32 %v202, %v380
    %v391 = vmul.f32 %v207, %v383
    %v392 = vmul.f32 %v202, %v386
    %v393 = vmul.f32 %v207, %v389
    %v394 = vmax.f32 %v390, %v392
    %v395 = vmax.f32 %v391, %v393
    %397 = vset.pattern.permute.xlu0 0
    %398 = vperm.xlu0 %397, %v286
    %v399 = vpop.permute.xlu0 %398
    %402 = vset.pattern.permute.xlu0 0
    %403 = vperm.xlu0 %402, %v291
    %v404 = vpop.permute.xlu0 %403
    %v406 = vmul.f32 %v202, %v399
    %v407 = vmul.f32 %v207, %v404
    %v408 = vsub.f32 %v406, %v394
    %v409 = vsub.f32 %v407, %v395
    %v410 = vmul.f32 %v408, 1.442695
    %v411 = vpow.pop %v410
    %v412 = vmul.f32 %v409, 1.442695
    %v413 = vpow.pop %v412
    %415 = vset.pattern.permute.xlu0 0
    %416 = vperm.xlu0 %415, %v370
    %v417 = vpop.permute.xlu0 %416
    %420 = vset.pattern.permute.xlu0 0
    %421 = vperm.xlu0 %420, %v375
    %v422 = vpop.permute.xlu0 %421
    %v424 = vmul.f32 %v411, %v417
    %v425 = vmul.f32 %v413, %v422
    %v426 = vadd.f32 %v424, 0.0
    %v427 = vadd.f32 %v425, 0.0
    %v428 = vadd.f32 %v411, 0.0
    %v429 = vadd.f32 %v413, 0.0
    %430 = vset.pattern.permute.xlu0 1
    %431 = vperm.xlu0 %430, %v286
    %v432 = vpop.permute.xlu0 %431
    %434 = vset.pattern.permute.xlu0 1
    %435 = vperm.xlu0 %434, %v291
    %v436 = vpop.permute.xlu0 %435
    %v438 = vmul.f32 %v202, %v432
    %v439 = vmul.f32 %v207, %v436
    %v440 = vsub.f32 %v438, %v394
    %v441 = vsub.f32 %v439, %v395
    %v442 = vmul.f32 %v440, 1.442695
    %v443 = vpow.pop %v442
    %v444 = vmul.f32 %v441, 1.442695
    %v445 = vpow.pop %v444
    %446 = vset.pattern.permute.xlu0 1
    %447 = vperm.xlu0 %446, %v370
    %v448 = vpop.permute.xlu0 %447
    %450 = vset.pattern.permute.xlu0 1
    %451 = vperm.xlu0 %450, %v375
    %v452 = vpop.permute.xlu0 %451
    %v454 = vmul.f32 %v443, %v448
    %v455 = vmul.f32 %v445, %v452
    %v456 = vadd.f32 %v426, %v454
    %v457 = vadd.f32 %v427, %v455
    %v458 = vadd.f32 %v428, %v443
    %v459 = vadd.f32 %v429, %v445
    %460 = vset.pattern.permute.xlu0 2
    %461 = vperm.xlu0 %460, %v286
    %v462 = vpop.permute.xlu0 %461
    %464 = vset.pattern.permute.xlu0 2
    %465 = vperm.xlu0 %464, %v291
    %v466 = vpop.permute.xlu0 %465
    %v468 = vmul.f32 %v202, %v462
    %v469 = vmul.f32 %v207, %v466
    %v470 = vsub.f32 %v468, %v394
    %v471 = vsub.f32 %v469, %v395
    %v472 = vmul.f32 %v470, 1.442695
    %v473 = vpow.pop %v472
    %v474 = vmul.f32 %v471, 1.442695
    %v475 = vpow.pop %v474
    %476 = vset.pattern.permute.xlu0 2
    %477 = vperm.xlu0 %476, %v370
    %v478 = vpop.permute.xlu0 %477
    %480 = vset.pattern.permute.xlu0 2
    %481 = vperm.xlu0 %480, %v375
    %v482 = vpop.permute.xlu0 %481
    %v484 = vmul.f32 %v473, %v478
    %v485 = vmul.f32 %v475, %v482
    %v486 = vadd.f32 %v456, %v484
    %v487 = vadd.f32 %v457, %v485
    %v488 = vadd.f32 %v458, %v473
    %v489 = vadd.f32 %v459, %v475
    %490 = vset.pattern.permute.xlu0 3
    %491 = vperm.xlu0 %490, %v286
    %v492 = vpop.permute.xlu0 %491
    %494 = vset.pattern.permute.xlu0 3
    %495 = vperm.xlu0 %494, %v291
    %v496 = vpop.permute.xlu0 %495
    %v498 = vmul.f32 %v202, %v492
    %v499 = vmul.f32 %v207, %v496
    %v500 = vsub.f32 %v498, %v394
    %v501 = vsub.f32 %v499, %v395
    %v502 = vmul.f32 %v500, 1.442695
    %v503 = vpow.pop %v502
    %v504 = vmul.f32 %v501, 1.442695
    %v505 = vpow.pop %v504
    %506 = vset.pattern.permute.xlu0 3
    %507 = vperm.xlu0 %506, %v370
    %v508 = vpop.permute.xlu0 %507
    %510 = vset.pattern.permute.xlu0 3
    %511 = vperm.xlu0 %510, %v375
    %v512 = vpop.permute.xlu0 %511
    %v514 = vmul.f32 %v503, %v508
    %v515 = vmul.f32 %v505, %v512
    %v516 = vadd.f32 %v486, %v514
    %v517 = vadd.f32 %v487, %v515
    %v518 = vadd.f32 %v488, %v503
    %v519 = vadd.f32 %v489, %v505
    %520 = vset.pattern.permute.xlu0 4
    %521 = vperm.xlu0 %520, %v286
    %v522 = vpop.permute.xlu0 %521
    %524 = vset.pattern.permute.xlu0 4
    %525 = vperm.xlu0 %524, %v291
    %v526 = vpop.permute.xlu0 %525
    %v528 = vmul.f32 %v202, %v522
    %v529 = vmul.f32 %v207, %v526
    %v530 = vsub.f32 %v528, %v394
    %v531 = vsub.f32 %v529, %v395
    %v532 = vmul.f32 %v530, 1.442695
    %v533 = vpow.pop %v532
    %v534 = vmul.f32 %v531, 1.442695
    %v535 = vpow.pop %v534
    %536 = vset.pattern.permute.xlu0 4
    %537 = vperm.xlu0 %536, %v370
    %v538 = vpop.permute.xlu0 %537
    %540 = vset.pattern.permute.xlu0 4
    %541 = vperm.xlu0 %540, %v375
    %v542 = vpop.permute.xlu0 %541
    %v544 = vmul.f32 %v533, %v538
    %v545 = vmul.f32 %v535, %v542
    %v546 = vadd.f32 %v516, %v544
    %v547 = vadd.f32 %v517, %v545
    %v548 = vadd.f32 %v518, %v533
    %v549 = vadd.f32 %v519, %v535
    %550 = vset.pattern.permute.xlu0 5
    %551 = vperm.xlu0 %550, %v286
    %v552 = vpop.permute.xlu0 %551
    %554 = vset.pattern.permute.xlu0 5
    %555 = vperm.xlu0 %554, %v291
    %v556 = vpop.permute.xlu0 %555
    %v558 = vmul.f32 %v202, %v552
    %v559 = vmul.f32 %v207, %v556
    %v560 = vsub.f32 %v558, %v394
    %v561 = vsub.f32 %v559, %v395
    %v562 = vmul.f32 %v560, 1.442695
    %v563 = vpow.pop %v562
    %v564 = vmul.f32 %v561, 1.442695
    %v565 = vpow.pop %v564
    %566 = vset.pattern.permute.xlu0 5
    %567 = vperm.xlu0 %566, %v370
    %v568 = vpop.permute.xlu0 %567
    %570 = vset.pattern.permute.xlu0 5
    %571 = vperm.xlu0 %570, %v375
    %v572 = vpop.permute.xlu0 %571
    %v574 = vmul.f32 %v563, %v568
    %v575 = vmul.f32 %v565, %v572
    %v576 = vadd.f32 %v546, %v574
    %v577 = vadd.f32 %v547, %v575
    %v578 = vadd.f32 %v548, %v563
    %v579 = vadd.f32 %v549, %v565
    %580 = vset.pattern.permute.xlu0 6
    %581 = vperm.xlu0 %580, %v286
    %v582 = vpop.permute.xlu0 %581
    %584 = vset.pattern.permute.xlu0 6
    %585 = vperm.xlu0 %584, %v291
    %v586 = vpop.permute.xlu0 %585
    %v588 = vmul.f32 %v202, %v582
    %v589 = vmul.f32 %v207, %v586
    %v590 = vsub.f32 %v588, %v394
    %v591 = vsub.f32 %v589, %v395
    %v592 = vmul.f32 %v590, 1.442695
    %v593 = vpow.pop %v592
    %v594 = vmul.f32 %v591, 1.442695
    %v595 = vpow.pop %v594
    %596 = vset.pattern.permute.xlu0 6
    %597 = vperm.xlu0 %596, %v370
    %v598 = vpop.permute.xlu0 %597
    %600 = vset.pattern.permute.xlu0 6
    %601 = vperm.xlu0 %600, %v375
    %v602 = vpop.permute.xlu0 %601
    %v604 = vmul.f32 %v593, %v598
    %v605 = vmul.f32 %v595, %v602
    %v606 = vadd.f32 %v576, %v604
    %v607 = vadd.f32 %v577, %v605
    %v608 = vadd.f32 %v578, %v593
    %v609 = vadd.f32 %v579, %v595
    %610 = vset.pattern.permute.xlu0 7
    %611 = vperm.xlu0 %610, %v286
    %v612 = vpop.permute.xlu0 %611
    %614 = vset.pattern.permute.xlu0 7
    %615 = vperm.xlu0 %614, %v291
    %v616 = vpop.permute.xlu0 %615
    %v618 = vmul.f32 %v202, %v612
    %v619 = vmul.f32 %v207, %v616
    %v620 = vsub.f32 %v618, %v394
    %v621 = vsub.f32 %v619, %v395
    %v622 = vmul.f32 %v620, 1.442695
    %v623 = vpow.pop %v622
    %v624 = vmul.f32 %v621, 1.442695
    %v625 = vpow.pop %v624
    %626 = vset.pattern.permute.xlu0 7
    %627 = vperm.xlu0 %626, %v370
    %v628 = vpop.permute.xlu0 %627
    %630 = vset.pattern.permute.xlu0 7
    %631 = vperm.xlu0 %630, %v375
    %v632 = vpop.permute.xlu0 %631
    %v634 = vmul.f32 %v623, %v628
    %v635 = vmul.f32 %v625, %v632
    %v636 = vadd.f32 %v606, %v634
    %v637 = vadd.f32 %v607, %v635
    %v638 = vadd.f32 %v608, %v623
    %v639 = vadd.f32 %v609, %v625
    %640 = vset.pattern.permute.xlu0 8
    %641 = vperm.xlu0 %640, %v286
    %v642 = vpop.permute.xlu0 %641
    %644 = vset.pattern.permute.xlu0 8
    %645 = vperm.xlu0 %644, %v291
    %v646 = vpop.permute.xlu0 %645
    %v648 = vmul.f32 %v202, %v642
    %v649 = vmul.f32 %v207, %v646
    %v650 = vsub.f32 %v648, %v394
    %v651 = vsub.f32 %v649, %v395
    %v652 = vmul.f32 %v650, 1.442695
    %v653 = vpow.pop %v652
    %v654 = vmul.f32 %v651, 1.442695
    %v655 = vpow.pop %v654
    %656 = vset.pattern.permute.xlu0 8
    %657 = vperm.xlu0 %656, %v370
    %v658 = vpop.permute.xlu0 %657
    %660 = vset.pattern.permute.xlu0 8
    %661 = vperm.xlu0 %660, %v375
    %v662 = vpop.permute.xlu0 %661
    %v664 = vmul.f32 %v653, %v658
    %v665 = vmul.f32 %v655, %v662
    %v666 = vadd.f32 %v636, %v664
    %v667 = vadd.f32 %v637, %v665
    %v668 = vadd.f32 %v638, %v653
    %v669 = vadd.f32 %v639, %v655
    %670 = vset.pattern.permute.xlu0 9
    %671 = vperm.xlu0 %670, %v286
    %v672 = vpop.permute.xlu0 %671
    %674 = vset.pattern.permute.xlu0 9
    %675 = vperm.xlu0 %674, %v291
    %v676 = vpop.permute.xlu0 %675
    %v678 = vmul.f32 %v202, %v672
    %v679 = vmul.f32 %v207, %v676
    %v680 = vsub.f32 %v678, %v394
    %v681 = vsub.f32 %v679, %v395
    %v682 = vmul.f32 %v680, 1.442695
    %v683 = vpow.pop %v682
    %v684 = vmul.f32 %v681, 1.442695
    %v685 = vpow.pop %v684
    %686 = vset.pattern.permute.xlu0 9
    %687 = vperm.xlu0 %686, %v370
    %v688 = vpop.permute.xlu0 %687
    %690 = vset.pattern.permute.xlu0 9
    %691 = vperm.xlu0 %690, %v375
    %v692 = vpop.permute.xlu0 %691
    %v694 = vmul.f32 %v683, %v688
    %v695 = vmul.f32 %v685, %v692
    %v696 = vadd.f32 %v666, %v694
    %v697 = vadd.f32 %v667, %v695
    %v698 = vadd.f32 %v668, %v683
    %v699 = vadd.f32 %v669, %v685
    %700 = vset.pattern.permute.xlu0 10
    %701 = vperm.xlu0 %700, %v286
    %v702 = vpop.permute.xlu0 %701
    %704 = vset.pattern.permute.xlu0 10
    %705 = vperm.xlu0 %704, %v291
    %v706 = vpop.permute.xlu0 %705
    %v708 = vmul.f32 %v202, %v702
    %v709 = vmul.f32 %v207, %v706
    %v710 = vsub.f32 %v708, %v394
    %v711 = vsub.f32 %v709, %v395
    %v712 = vmul.f32 %v710, 1.442695
    %v713 = vpow.pop %v712
    %v714 = vmul.f32 %v711, 1.442695
    %v715 = vpow.pop %v714
    %716 = vset.pattern.permute.xlu0 10
    %717 = vperm.xlu0 %716, %v370
    %v718 = vpop.permute.xlu0 %717
    %720 = vset.pattern.permute.xlu0 10
    %721 = vperm.xlu0 %720, %v375
    %v722 = vpop.permute.xlu0 %721
    %v724 = vmul.f32 %v713, %v718
    %v725 = vmul.f32 %v715, %v722
    %v726 = vadd.f32 %v696, %v724
    %v727 = vadd.f32 %v697, %v725
    %v728 = vadd.f32 %v698, %v713
    %v729 = vadd.f32 %v699, %v715
    %730 = vset.pattern.permute.xlu0 11
    %731 = vperm.xlu0 %730, %v286
    %v732 = vpop.permute.xlu0 %731
    %734 = vset.pattern.permute.xlu0 11
    %735 = vperm.xlu0 %734, %v291
    %v736 = vpop.permute.xlu0 %735
    %v738 = vmul.f32 %v202, %v732
    %v739 = vmul.f32 %v207, %v736
    %v740 = vsub.f32 %v738, %v394
    %v741 = vsub.f32 %v739, %v395
    %v742 = vmul.f32 %v740, 1.442695
    %v743 = vpow.pop %v742
    %v744 = vmul.f32 %v741, 1.442695
    %v745 = vpow.pop %v744
    %746 = vset.pattern.permute.xlu0 11
    %747 = vperm.xlu0 %746, %v370
    %v748 = vpop.permute.xlu0 %747
    %750 = vset.pattern.permute.xlu0 11
    %751 = vperm.xlu0 %750, %v375
    %v752 = vpop.permute.xlu0 %751
    %v754 = vmul.f32 %v743, %v748
    %v755 = vmul.f32 %v745, %v752
    %v756 = vadd.f32 %v726, %v754
    %v757 = vadd.f32 %v727, %v755
    %v758 = vadd.f32 %v728, %v743
    %v759 = vadd.f32 %v729, %v745
    %760 = vset.pattern.permute.xlu0 12
    %761 = vperm.xlu0 %760, %v286
    %v762 = vpop.permute.xlu0 %761
    %764 = vset.pattern.permute.xlu0 12
    %765 = vperm.xlu0 %764, %v291
    %v766 = vpop.permute.xlu0 %765
    %v768 = vmul.f32 %v202, %v762
    %v769 = vmul.f32 %v207, %v766
    %v770 = vsub.f32 %v768, %v394
    %v771 = vsub.f32 %v769, %v395
    %v772 = vmul.f32 %v770, 1.442695
    %v773 = vpow.pop %v772
    %v774 = vmul.f32 %v771, 1.442695
    %v775 = vpow.pop %v774
    %776 = vset.pattern.permute.xlu0 12
    %777 = vperm.xlu0 %776, %v370
    %v778 = vpop.permute.xlu0 %777
    %780 = vset.pattern.permute.xlu0 12
    %781 = vperm.xlu0 %780, %v375
    %v782 = vpop.permute.xlu0 %781
    %v784 = vmul.f32 %v773, %v778
    %v785 = vmul.f32 %v775, %v782
    %v786 = vadd.f32 %v756, %v784
    %v787 = vadd.f32 %v757, %v785
    %v788 = vadd.f32 %v758, %v773
    %v789 = vadd.f32 %v759, %v775
    %790 = vset.pattern.permute.xlu0 13
    %791 = vperm.xlu0 %790, %v286
    %v792 = vpop.permute.xlu0 %791
    %794 = vset.pattern.permute.xlu0 13
    %795 = vperm.xlu0 %794, %v291
    %v796 = vpop.permute.xlu0 %795
    %v798 = vmul.f32 %v202, %v792
    %v799 = vmul.f32 %v207, %v796
    %v800 = vsub.f32 %v798, %v394
    %v801 = vsub.f32 %v799, %v395
    %v802 = vmul.f32 %v800, 1.442695
    %v803 = vpow.pop %v802
    %v804 = vmul.f32 %v801, 1.442695
    %v805 = vpow.pop %v804
    %806 = vset.pattern.permute.xlu0 13
    %807 = vperm.xlu0 %806, %v370
    %v808 = vpop.permute.xlu0 %807
    %810 = vset.pattern.permute.xlu0 13
    %811 = vperm.xlu0 %810, %v375
    %v812 = vpop.permute.xlu0 %811
    %v814 = vmul.f32 %v803, %v808
    %v815 = vmul.f32 %v805, %v812
    %v816 = vadd.f32 %v786, %v814
    %v817 = vadd.f32 %v787, %v815
    %v818 = vadd.f32 %v788, %v803
    %v819 = vadd.f32 %v789, %v805
    %820 = vset.pattern.permute.xlu0 14
    %821 = vperm.xlu0 %820, %v286
    %v822 = vpop.permute.xlu0 %821
    %824 = vset.pattern.permute.xlu0 14
    %825 = vperm.xlu0 %824, %v291
    %v826 = vpop.permute.xlu0 %825
    %v828 = vmul.f32 %v202, %v822
    %v829 = vmul.f32 %v207, %v826
    %v830 = vsub.f32 %v828, %v394
    %v831 = vsub.f32 %v829, %v395
    %v832 = vmul.f32 %v830, 1.442695
    %v833 = vpow.pop %v832
    %v834 = vmul.f32 %v831, 1.442695
    %v835 = vpow.pop %v834
    %836 = vset.pattern.permute.xlu0 14
    %837 = vperm.xlu0 %836, %v370
    %v838 = vpop.permute.xlu0 %837
    %840 = vset.pattern.permute.xlu0 14
    %841 = vperm.xlu0 %840, %v375
    %v842 = vpop.permute.xlu0 %841
    %v844 = vmul.f32 %v833, %v838
    %v845 = vmul.f32 %v835, %v842
    %v846 = vadd.f32 %v816, %v844
    %v847 = vadd.f32 %v817, %v845
    %v848 = vadd.f32 %v818, %v833
    %v849 = vadd.f32 %v819, %v835
    %850 = vset.pattern.permute.xlu0 15
    %851 = vperm.xlu0 %850, %v286
    %v852 = vpop.permute.xlu0 %851
    %854 = vset.pattern.permute.xlu0 15
    %855 = vperm.xlu0 %854, %v291
    %v856 = vpop.permute.xlu0 %855
    %v858 = vmul.f32 %v202, %v852
    %v859 = vmul.f32 %v207, %v856
    %v860 = vsub.f32 %v858, %v394
    %v861 = vsub.f32 %v859, %v395
    %v862 = vmul.f32 %v860, 1.442695
    %v863 = vpow.pop %v862
    %v864 = vmul.f32 %v861, 1.442695
    %v865 = vpow.pop %v864
    %866 = vset.pattern.permute.xlu0 15
    %867 = vperm.xlu0 %866, %v370
    %v868 = vpop.permute.xlu0 %867
    %870 = vset.pattern.permute.xlu0 15
    %871 = vperm.xlu0 %870, %v375
    %v872 = vpop.permute.xlu0 %871
    %v874 = vmul.f32 %v863, %v868
    %v875 = vmul.f32 %v865, %v872
    %v876 = vadd.f32 %v846, %v874
    %v877 = vadd.f32 %v847, %v875
    %v878 = vadd.f32 %v848, %v863
    %v879 = vadd.f32 %v849, %v865
    %v880 = vrcp.pop %v878
    %v881 = vmul.f32 %v876, %v880
    %v882 = vrcp.pop %v879
    %v883 = vmul.f32 %v877, %v882
    %v884 = vld [vmem:[%s7] sm:$0xff]
    %v885 = vld [vmem:[%s7 + $0x8] sm:$0xff]
    %v886 = vld [vmem:[#allocation11] sm:$0x1]
    %v888 = vlaneseq
    %v889 = vshrl.u32 %v888, 7
    %v890 = vsub.s32 0, %v889
    %v891 = vrot.slane %v886, %v890
    %v894 = vsel %vm128, %v881, 0
    %v897 = vsel %vm128, %v883, 0
    %899 = vmatprep.subr.mxu0 0.0
    %900 = vmatpush1.msra.mxu0 %v884
    %901 = vmatprep.subr.mxu0 0.0
    %902 = vmatpush1.msra.mxu0 %v885
    %903 = vmatprep.subr.mxu0 0.0
    %904 = vmatpush1.msra.mxu0 0.0
    %905 = vmatprep.subr.mxu0 0.0
    %906 = vmatpush1.msra.mxu0 0.0
    %907 = vmatprep.subr.mxu0 0.0
    %908 = vmatpush1.msra.mxu0 0.0
    %909 = vmatprep.subr.mxu0 0.0
    %910 = vmatpush1.msra.mxu0 0.0
    %911 = vmatprep.subr.mxu0 0.0
    %912 = vmatpush1.msra.mxu0 0.0
    %913 = vmatprep.subr.mxu0 0.0
    %914 = vmatpush1.msra.mxu0 0.0
    %915 = vmatprep.subr.mxu0 0.0
    %916 = vmatpush1.msra.mxu0 0.0
    %917 = vmatprep.subr.mxu0 0.0
    %918 = vmatpush1.msra.mxu0 0.0
    %919 = vmatprep.subr.mxu0 0.0
    %920 = vmatpush1.msra.mxu0 0.0
    %921 = vmatprep.subr.mxu0 0.0
    %922 = vmatpush1.msra.mxu0 0.0
    %923 = vmatprep.subr.mxu0 0.0
    %924 = vmatpush1.msra.mxu0 0.0
    %925 = vmatprep.subr.mxu0 0.0
    %926 = vmatpush1.msra.mxu0 0.0
    %927 = vmatprep.subr.mxu0 0.0
    %928 = vmatpush1.msra.mxu0 0.0
    %929 = vmatprep.subr.mxu0 0.0
    %930 = vmatpush1.msra.mxu0 0.0
    %931 = vmatprep.subr.mxu0 0.0
    %932 = vmatpush1.msra.mxu0 0.0
    %933 = vmatprep.subr.mxu0 0.0
    %934 = vmatpush1.msra.mxu0 0.0
    %935 = vmatprep.subr.mxu0 0.0
    %936 = vmatpush1.msra.mxu0 0.0
    %937 = vmatprep.subr.mxu0 0.0
    %938 = vmatpush1.msra.mxu0 0.0
    %939 = vmatprep.subr.mxu0 0.0
    %940 = vmatpush1.msra.mxu0 0.0
    %941 = vmatprep.subr.mxu0 0.0
    %942 = vmatpush1.msra.mxu0 0.0
    %943 = vmatprep.subr.mxu0 0.0
    %944 = vmatpush1.msra.mxu0 0.0
    %945 = vmatprep.subr.mxu0 0.0
    %946 = vmatpush1.msra.mxu0 0.0
    %947 = vmatprep.subr.mxu0 0.0
    %948 = vmatpush1.msra.mxu0 0.0
    %949 = vmatprep.subr.mxu0 0.0
    %950 = vmatpush1.msra.mxu0 0.0
    %951 = vmatprep.subr.mxu0 0.0
    %952 = vmatpush1.msra.mxu0 0.0
    %953 = vmatprep.subr.mxu0 0.0
    %954 = vmatpush1.msra.mxu0 0.0
    %955 = vmatprep.subr.mxu0 0.0
    %956 = vmatpush1.msra.mxu0 0.0
    %957 = vmatprep.subr.mxu0 0.0
    %958 = vmatpush1.msra.mxu0 0.0
    %959 = vmatprep.subr.mxu0 0.0
    %960 = vmatpush1.msra.mxu0 0.0
    %961 = vmatprep.subr.mxu0 0.0
    %962 = vmatpush1.msra.mxu0 0.0
    %963 = vmatprep.mubr.f32.mxu0 0.0
    %964 = vmatmul.mubr.f32.gmra.mrb[0].mxu0 %v894
    %v965 = vpop.f32.mrb[0].mxu0
    %v966 = vadd.f32 %v891, %v965
    %v967 = vpop.f32.mrb[0].mxu0
    %968 = vmatprep.mubr.f32.mxu0 0.0
    %969 = vmatmul.mubr.f32.gmra.mrb[0].mxu0 %v897
    %v970 = vpop.f32.mrb[0].mxu0
    %v971 = vadd.f32 %v891, %v970
    %v972 = vpop.f32.mrb[0].mxu0
    %973 = vdwg.mxu0
    %v974 = vadd.f32 %v966, %v117
    %v975 = vadd.f32 %v971, %v118
    %v976 = vld [vmem:[%s9] sm:$0xff]
    %v977 = vld [vmem:[%s9 + $0x8] sm:$0xff]
    %v978 = vld [vmem:[%s10] sm:$0x1]
    %v980 = vlaneseq
    %v981 = vshrl.u32 %v980, 7
    %v982 = vsub.s32 0, %v981
    %v983 = vrot.slane %v978, %v982
    %v986 = vsel %vm128, %v974, 0
    %v989 = vsel %vm128, %v975, 0
    %991 = vmatprep.subr.mxu0 0.0
    %992 = vmatpush1.msra.mxu0 %v976
    %993 = vmatprep.subr.mxu0 0.0
    %994 = vmatpush1.msra.mxu0 %v977
    %995 = vmatprep.subr.mxu0 0.0
    %996 = vmatpush1.msra.mxu0 0.0
    %997 = vmatprep.subr.mxu0 0.0
    %998 = vmatpush1.msra.mxu0 0.0
    %999 = vmatprep.subr.mxu0 0.0
    %1000 = vmatpush1.msra.mxu0 0.0
    %1001 = vmatprep.subr.mxu0 0.0
    %1002 = vmatpush1.msra.mxu0 0.0
    %1003 = vmatprep.subr.mxu0 0.0
    %1004 = vmatpush1.msra.mxu0 0.0
    %1005 = vmatprep.subr.mxu0 0.0
    %1006 = vmatpush1.msra.mxu0 0.0
    %1007 = vmatprep.subr.mxu0 0.0
    %1008 = vmatpush1.msra.mxu0 0.0
    %1009 = vmatprep.subr.mxu0 0.0
    %1010 = vmatpush1.msra.mxu0 0.0
    %1011 = vmatprep.subr.mxu0 0.0
    %1012 = vmatpush1.msra.mxu0 0.0
    %1013 = vmatprep.subr.mxu0 0.0
    %1014 = vmatpush1.msra.mxu0 0.0
    %1015 = vmatprep.subr.mxu0 0.0
    %1016 = vmatpush1.msra.mxu0 0.0
    %1017 = vmatprep.subr.mxu0 0.0
    %1018 = vmatpush1.msra.mxu0 0.0
    %1019 = vmatprep.subr.mxu0 0.0
    %1020 = vmatpush1.msra.mxu0 0.0
    %1021 = vmatprep.subr.mxu0 0.0
    %1022 = vmatpush1.msra.mxu0 0.0
    %1023 = vmatprep.subr.mxu0 0.0
    %1024 = vmatpush1.msra.mxu0 0.0
    %1025 = vmatprep.subr.mxu0 0.0
    %1026 = vmatpush1.msra.mxu0 0.0
    %1027 = vmatprep.subr.mxu0 0.0
    %1028 = vmatpush1.msra.mxu0 0.0
    %1029 = vmatprep.subr.mxu0 0.0
    %1030 = vmatpush1.msra.mxu0 0.0
    %1031 = vmatprep.subr.mxu0 0.0
    %1032 = vmatpush1.msra.mxu0 0.0
    %1033 = vmatprep.subr.mxu0 0.0
    %1034 = vmatpush1.msra.mxu0 0.0
    %1035 = vmatprep.subr.mxu0 0.0
    %1036 = vmatpush1.msra.mxu0 0.0
    %1037 = vmatprep.subr.mxu0 0.0
    %1038 = vmatpush1.msra.mxu0 0.0
    %1039 = vmatprep.subr.mxu0 0.0
    %1040 = vmatpush1.msra.mxu0 0.0
    %1041 = vmatprep.subr.mxu0 0.0
    %1042 = vmatpush1.msra.mxu0 0.0
    %1043 = vmatprep.subr.mxu0 0.0
    %1044 = vmatpush1.msra.mxu0 0.0
    %1045 = vmatprep.subr.mxu0 0.0
    %1046 = vmatpush1.msra.mxu0 0.0
    %1047 = vmatprep.subr.mxu0 0.0
    %1048 = vmatpush1.msra.mxu0 0.0
    %1049 = vmatprep.subr.mxu0 0.0
    %1050 = vmatpush1.msra.mxu0 0.0
    %1051 = vmatprep.subr.mxu0 0.0
    %1052 = vmatpush1.msra.mxu0 0.0
    %1053 = vmatprep.subr.mxu0 0.0
    %1054 = vmatpush1.msra.mxu0 0.0
    %1055 = vmatprep.mubr.f32.mxu0 0.0
    %1056 = vmatmul.mubr.f32.gmra.mrb[0].mxu0 %v986
    %v1057 = vpop.f32.mrb[0].mxu0
    %v1058 = vadd.f32 %v983, %v1057
    %v1059 = vpop.f32.mrb[0].mxu0
    %1060 = vmatprep.mubr.f32.mxu0 0.0
    %1061 = vmatmul.mubr.f32.gmra.mrb[0].mxu0 %v989
    %v1062 = vpop.f32.mrb[0].mxu0
    %v1063 = vadd.f32 %v983, %v1062
    %v1064 = vpop.f32.mrb[0].mxu0
    %1065 = vdwg.mxu0
    %vm1066 = vcmask 261120
    %1067 = vst.msk [vmem:[#allocation13] sm:$0xff] %vm1066, %v1058
    %1068 = vst.msk [vmem:[#allocation13 + $0x8] sm:$0xff] %vm1066, %v1063
    // Predicated region
    $region70: #{tpu_custom_call.1} parent=1 // pred_check
      _
    $region71: #{tpu_custom_call.1} parent=1 // pred_check_branch
      %1070 = sbr.rel (0) target = $region73
    $region72: #{tpu_custom_call.1} parent=1 // pred_region
      %s1072 = ssub.s32 256, 256
      %1073 = vsyncadd [#allocation4], %s1072
      %s1074 = sshll.u32 [#allocation13], 4
      %s1075 = int_to_ptr.vmem [resolvable:$true] %s1074
      %1080 = dma.vmem_to_hbm [thread:$0]  %s1075, 256, %s11, [#allocation4], 128, 128, 8
    $region73: #{tpu_custom_call.1} parent=1 // pred_fallthru
      _
    // Predicated region
    $region74: #{tpu_custom_call.1} parent=1 // pred_check
      _
    $region75: #{tpu_custom_call.1} parent=1 // pred_check_branch
      %1082 = sbr.rel (0) target = $region77
    $region76: #{tpu_custom_call.1} parent=1 // pred_region
      %1083 = dma.done [#allocation4], 256
    $region77: #{tpu_custom_call.1} parent=1 // pred_fallthru
      _
    %1084 = vsyncpa [#allocation3], 1
    %1085 = vsyncpa [#allocation6], 1
    %1086 = vsyncpa [#allocation9], 1
    %1087 = vsyncpa [#allocation12], 1
    %1088 = vsyncpa [#allocation4], 1

</llo_original>
